<compile_context>
chip_gen: v6e
topology: v6e:2x2x1
jax: 0.10.0
libtpu: 0.0.40
codegen_flags: <defaults>
</compile_context>

<pallas_src>
import functools

import jax
import jax.numpy as jnp
from jax.experimental import pallas as pl
from jax.experimental.pallas import tpu as pltpu

HIDDEN = 512
OUT_PAD = 128  # lane-dense padded width of the fused output head


def _kernel(hidden,
            x_ref,
            w1_ref, b1_ref,
            w2v_ref, b2v_ref,
            w2a_ref, b2a_ref,
            w3v_ref, w3a_ref, b3_ref,
            out_ref):
    x = x_ref[...].astype(jnp.bfloat16)                          # (TB, obs_pad)

    # ---- layer 1 (value|adv fused): (TB, 2H), f32 accumulate ----
    h1 = jnp.dot(x, w1_ref[...],
                 preferred_element_type=jnp.float32) + b1_ref[...]
    h1 = jnp.maximum(h1, 0.0)

    hv = h1[:, :hidden].astype(jnp.bfloat16)                     # (TB, H)
    ha = h1[:, hidden:].astype(jnp.bfloat16)                     # (TB, H)

    # ---- layer 2, per branch ----
    hv2 = jnp.maximum(
        jnp.dot(hv, w2v_ref[...],
                preferred_element_type=jnp.float32) + b2v_ref[...], 0.0
    ).astype(jnp.bfloat16)
    ha2 = jnp.maximum(
        jnp.dot(ha, w2a_ref[...],
                preferred_element_type=jnp.float32) + b2a_ref[...], 0.0
    ).astype(jnp.bfloat16)

    # ---- layer 3: dueling combine pre-folded into the weights at pack time,
    # so this is just two dots + bias -> Q-values, stored lane-dense. ----
    y = (jnp.dot(hv2, w3v_ref[...], preferred_element_type=jnp.float32)
         + jnp.dot(ha2, w3a_ref[...], preferred_element_type=jnp.float32)
         + b3_ref[...])                                           # (TB, OUT_PAD)
    out_ref[...] = y


def pack_params(params):
    """One-time weight repacking (do NOT call per forward)."""
    obs_len = params["w1v"].shape[0]
    hidden = params["w2v"].shape[0]
    actions_n = params["w3a"].shape[1]
    assert actions_n <= OUT_PAD
    obs_pad = ((obs_len + 7) // 8) * 8

    # fused layer-1 (value | adv), obs dim padded to a multiple of 8
    w1 = jnp.concatenate([params["w1v"], params["w1a"]], axis=1)
    if obs_pad != obs_len:
        w1 = jnp.pad(w1, ((0, obs_pad - obs_len), (0, 0)))
    w1 = w1.astype(jnp.bfloat16)
    b1 = jnp.concatenate([params["b1v"], params["b1a"]], axis=1).astype(jnp.float32)

    # fold dueling combine into the output head (in f32, then cast to bf16):
    #   Q = val + adv - mean(adv)
    #   => W3v_eff = w3v broadcast over all A columns
    #      W3a_eff = w3a @ (I_A - 1/A);  b3_eff = b3v + b3a @ (I_A - 1/A)
    A = actions_n
    comb = jnp.eye(A, dtype=jnp.float32) - 1.0 / A
    w3v_eff = jnp.broadcast_to(params["w3v"].astype(jnp.float32), (hidden, A))
    w3a_eff = params["w3a"].astype(jnp.float32) @ comb
    b3_eff = params["b3v"].astype(jnp.float32) + params["b3a"].astype(jnp.float32) @ comb

    w3v_head = jnp.zeros((hidden, OUT_PAD), jnp.float32).at[:, :A].set(w3v_eff)
    w3a_head = jnp.zeros((hidden, OUT_PAD), jnp.float32).at[:, :A].set(w3a_eff)
    b3 = jnp.zeros((1, OUT_PAD), jnp.float32).at[:, :A].set(b3_eff)

    return dict(
        w1=w1, b1=b1,
        w2v=params["w2v"].astype(jnp.bfloat16), b2v=params["b2v"].astype(jnp.float32),
        w2a=params["w2a"].astype(jnp.bfloat16), b2a=params["b2a"].astype(jnp.float32),
        w3v_head=w3v_head.astype(jnp.bfloat16),
        w3a_head=w3a_head.astype(jnp.bfloat16),
        b3=b3,
    )


@functools.partial(jax.jit, static_argnames=("actions_n", "tile_b"))
def simple_ffdqn_forward(x, packed, actions_n, *, tile_b=None):
    """x: (batch, obs_len) float32.  packed: output of pack_params()."""
    batch, obs_len = x.shape
    obs_pad = packed["w1"].shape[0]
    hidden = packed["w2v"].shape[0]

    # ---- batch tile selection (static at trace time) ----
    if tile_b is None:
        if batch >= 1024:
            tile_b = 512            # amortize grid-step overhead, >=2 tiles for v7x
        elif batch >= 512:
            tile_b = 256
        else:
            tile_b = min(256, ((batch + 7) // 8) * 8)
    num_tiles = pl.cdiv(batch, tile_b)
    padded_batch = num_tiles * tile_b

    if obs_pad != obs_len:
        x = jnp.pad(x, ((0, 0), (0, obs_pad - obs_len)))
    if padded_batch != batch:
        x = jnp.pad(x, ((0, padded_batch - batch), (0, 0)))

    in_specs = [
        pl.BlockSpec((tile_b, obs_pad), lambda i: (i, 0)),        # x (streamed, f32)
        pl.BlockSpec((obs_pad, 2 * hidden), lambda i: (0, 0)),    # w1 (resident)
        pl.BlockSpec((1, 2 * hidden), lambda i: (0, 0)),          # b1
        pl.BlockSpec((hidden, hidden), lambda i: (0, 0)),         # w2v
        pl.BlockSpec((1, hidden), lambda i: (0, 0)),              # b2v
        pl.BlockSpec((hidden, hidden), lambda i: (0, 0)),         # w2a
        pl.BlockSpec((1, hidden), lambda i: (0, 0)),              # b2a
        pl.BlockSpec((hidden, OUT_PAD), lambda i: (0, 0)),        # w3v_head
        pl.BlockSpec((hidden, OUT_PAD), lambda i: (0, 0)),        # w3a_head
        pl.BlockSpec((1, OUT_PAD), lambda i: (0, 0)),             # b3
    ]
    out_specs = pl.BlockSpec((tile_b, OUT_PAD), lambda i: (i, 0))  # lane-dense store

    out_padded = pl.pallas_call(
        functools.partial(_kernel, hidden),
        out_shape=jax.ShapeDtypeStruct((padded_batch, OUT_PAD), jnp.float32),
        grid=(num_tiles,),
        in_specs=in_specs,
        out_specs=out_specs,
        compiler_params=pltpu.CompilerParams(
            dimension_semantics=("parallel",),
            vmem_limit_bytes=32 * 1024 * 1024),
    )(x, packed["w1"], packed["b1"],
      packed["w2v"], packed["b2v"],
      packed["w2a"], packed["b2a"],
      packed["w3v_head"], packed["w3a_head"], packed["b3"])

    return out_padded[:batch, :actions_n]


def init_params(key, obs_len, actions_n, hidden=HIDDEN):
    """Deterministic synthetic init (shapes match the PyTorch module)."""
    ks = jax.random.split(key, 12)

    def lin(kw, kb, fan_in, fan_out):
        # torch.nn.Linear default init: U(-1/sqrt(fan_in), 1/sqrt(fan_in))
        bound = 1.0 / jnp.sqrt(jnp.asarray(fan_in, jnp.float32))
        w = jax.random.uniform(kw, (fan_in, fan_out), jnp.float32, -bound, bound)
        b = jax.random.uniform(kb, (1, fan_out), jnp.float32, -bound, bound)
        return w, b

    w1v, b1v = lin(ks[0], ks[1], obs_len, hidden)
    w2v, b2v = lin(ks[2], ks[3], hidden, hidden)
    w3v, b3v = lin(ks[4], ks[5], hidden, 1)
    w1a, b1a = lin(ks[6], ks[7], obs_len, hidden)
    w2a, b2a = lin(ks[8], ks[9], hidden, hidden)
    w3a, b3a = lin(ks[10], ks[11], hidden, actions_n)

    return dict(w1v=w1v, b1v=b1v, w2v=w2v, b2v=b2v, w3v=w3v, b3v=b3v,
                w1a=w1a, b1a=b1a, w2a=w2a, b2a=b2a, w3a=w3a, b3a=b3a)


def reference_forward(x, p):
    """Pure-JAX f32 reference matching the PyTorch forward."""
    def mlp(x, w1, b1, w2, b2, w3, b3):
        h = jnp.maximum(x @ w1 + b1, 0.0)
        h = jnp.maximum(h @ w2 + b2, 0.0)
        return h @ w3 + b3
    val = mlp(x, p["w1v"], p["b1v"], p["w2v"], p["b2v"], p["w3v"], p["b3v"])
    adv = mlp(x, p["w1a"], p["b1a"], p["w2a"], p["b2a"], p["w3a"], p["b3a"])
    return val + adv - adv.mean(axis=1, keepdims=True)


def reference_packed(x, packed, actions_n):
    """Emulates exactly what the kernel computes (bf16 weights/activations, f32 acc)."""
    obs_pad = packed["w1"].shape[0]
    hidden = packed["w2v"].shape[0]
    f32 = lambda a: a.astype(jnp.float32)
    xp = jnp.pad(x, ((0, 0), (0, obs_pad - x.shape[1]))).astype(jnp.bfloat16)
    h1 = jnp.maximum(f32(xp) @ f32(packed["w1"]) + packed["b1"], 0.0)
    hv = h1[:, :hidden].astype(jnp.bfloat16)
    ha = h1[:, hidden:].astype(jnp.bfloat16)
    hv2 = jnp.maximum(f32(hv) @ f32(packed["w2v"]) + packed["b2v"], 0.0).astype(jnp.bfloat16)
    ha2 = jnp.maximum(f32(ha) @ f32(packed["w2a"]) + packed["b2a"], 0.0).astype(jnp.bfloat16)
    y = (f32(hv2) @ f32(packed["w3v_head"])
         + f32(ha2) @ f32(packed["w3a_head"]) + packed["b3"])
    return y[:, :actions_n]


if __name__ == "__main__":
    key = jax.random.PRNGKey(0)
    k_x, k_p = jax.random.split(key)

    batch, obs_len, actions_n = 8, 32, 8
    x = jax.random.normal(k_x, (batch, obs_len), jnp.float32)
    params = init_params(k_p, obs_len, actions_n)
    packed = pack_params(params)          # one-time repack, outside the per-call path

    out = simple_ffdqn_forward(x, packed, actions_n)
    out = jax.block_until_ready(out)
    assert out.shape == (batch, actions_n)

    # Tight check vs an exact emulation of the kernel's bf16/f32 arithmetic.
    ref_q = reference_packed(x, packed, actions_n)
    assert jnp.allclose(out, ref_q, atol=1e-2, rtol=1e-2), "mismatch vs packed bf16 reference"

    # Looser check vs the pure-f32 PyTorch-equivalent forward (bf16 weight rounding).
    ref_f32 = reference_forward(x, params)
    assert jnp.allclose(out, ref_f32, atol=5e-2, rtol=5e-2), "mismatch vs f32 reference"

    print("KERNEL_OK")
</pallas_src>

<mosaic_0001>
module attributes {stable_mosaic.version = 11 : i64} {
  func.func @_kernel(%arg0: i32, %arg1: memref<8x32xf32, #tpu.memory_space<vmem>>, %arg2: memref<32x1024xbf16, #tpu.memory_space<vmem>>, %arg3: memref<1x1024xf32, #tpu.memory_space<vmem>>, %arg4: memref<512x512xbf16, #tpu.memory_space<vmem>>, %arg5: memref<1x512xf32, #tpu.memory_space<vmem>>, %arg6: memref<512x512xbf16, #tpu.memory_space<vmem>>, %arg7: memref<1x512xf32, #tpu.memory_space<vmem>>, %arg8: memref<512x128xbf16, #tpu.memory_space<vmem>>, %arg9: memref<512x128xbf16, #tpu.memory_space<vmem>>, %arg10: memref<1x128xf32, #tpu.memory_space<vmem>>, %arg11: memref<8x128xf32, #tpu.memory_space<vmem>>) attributes {dimension_semantics = [#tpu.dimension_semantics<parallel>], iteration_bounds = array<i64: 1>, scalar_prefetch = 0 : i64, scratch_operands = 0 : i64, tpu.core_type = #tpu.core_type<tc>, window_params = [{transform_indices = @transform_0, window_bounds = array<i64: 8, 32>}, {pipeline_mode = #tpu.pipeline_mode<synchronous>, transform_indices = @transform_1, window_bounds = array<i64: 32, 1024>}, {pipeline_mode = #tpu.pipeline_mode<synchronous>, transform_indices = @transform_2, window_bounds = array<i64: 1, 1024>}, {pipeline_mode = #tpu.pipeline_mode<synchronous>, transform_indices = @transform_3, window_bounds = array<i64: 512, 512>}, {pipeline_mode = #tpu.pipeline_mode<synchronous>, transform_indices = @transform_4, window_bounds = array<i64: 1, 512>}, {pipeline_mode = #tpu.pipeline_mode<synchronous>, transform_indices = @transform_5, window_bounds = array<i64: 512, 512>}, {pipeline_mode = #tpu.pipeline_mode<synchronous>, transform_indices = @transform_6, window_bounds = array<i64: 1, 512>}, {pipeline_mode = #tpu.pipeline_mode<synchronous>, transform_indices = @transform_7, window_bounds = array<i64: 512, 128>}, {pipeline_mode = #tpu.pipeline_mode<synchronous>, transform_indices = @transform_8, window_bounds = array<i64: 512, 128>}, {pipeline_mode = #tpu.pipeline_mode<synchronous>, transform_indices = @transform_9, window_bounds = array<i64: 1, 128>}, {transform_indices = @transform_10, window_bounds = array<i64: 8, 128>}]} {
    %c0 = arith.constant 0 : index
    %c0_0 = arith.constant 0 : index
    %0 = vector.load %arg1[%c0, %c0_0] : memref<8x32xf32, #tpu.memory_space<vmem>>, vector<8x32xf32>
    %1 = arith.truncf %0 : vector<8x32xf32> to vector<8x32xbf16>
    %c0_1 = arith.constant 0 : index
    %c0_2 = arith.constant 0 : index
    %2 = vector.load %arg2[%c0_1, %c0_2] : memref<32x1024xbf16, #tpu.memory_space<vmem>>, vector<32x1024xbf16>
    %cst = arith.constant dense<0.000000e+00> : vector<8x1024xf32>
    %3 = tpu.matmul %1, %2, %cst {dimension_numbers = #tpu.dot_dimension_numbers<[1], [0], [0], [1], [0, 0, 1, 1], [], []>} : vector<8x32xbf16>, vector<32x1024xbf16>, vector<8x1024xf32> -> vector<8x1024xf32>
    %c0_3 = arith.constant 0 : index
    %c0_4 = arith.constant 0 : index
    %4 = vector.load %arg3[%c0_3, %c0_4] : memref<1x1024xf32, #tpu.memory_space<vmem>>, vector<1x1024xf32>
    %5 = vector.broadcast %4 : vector<1x1024xf32> to vector<8x1024xf32>
    %6 = arith.addf %3, %5 : vector<8x1024xf32>
    %cst_5 = arith.constant 0.000000e+00 : f32
    %7 = vector.broadcast %cst_5 : f32 to vector<8x1024xf32>
    %8 = arith.maximumf %6, %7 : vector<8x1024xf32>
    %9 = vector.extract_strided_slice %8 {offsets = [0, 0], sizes = [8, 512], strides = [1, 1]} : vector<8x1024xf32> to vector<8x512xf32>
    %10 = arith.truncf %9 : vector<8x512xf32> to vector<8x512xbf16>
    %11 = vector.extract_strided_slice %8 {offsets = [0, 512], sizes = [8, 512], strides = [1, 1]} : vector<8x1024xf32> to vector<8x512xf32>
    %12 = arith.truncf %11 : vector<8x512xf32> to vector<8x512xbf16>
    %c0_6 = arith.constant 0 : index
    %c0_7 = arith.constant 0 : index
    %13 = vector.load %arg4[%c0_6, %c0_7] : memref<512x512xbf16, #tpu.memory_space<vmem>>, vector<512x512xbf16>
    %cst_8 = arith.constant dense<0.000000e+00> : vector<8x512xf32>
    %14 = tpu.matmul %10, %13, %cst_8 {dimension_numbers = #tpu.dot_dimension_numbers<[1], [0], [0], [1], [0, 0, 1, 1], [], []>} : vector<8x512xbf16>, vector<512x512xbf16>, vector<8x512xf32> -> vector<8x512xf32>
    %c0_9 = arith.constant 0 : index
    %c0_10 = arith.constant 0 : index
    %15 = vector.load %arg5[%c0_9, %c0_10] : memref<1x512xf32, #tpu.memory_space<vmem>>, vector<1x512xf32>
    %16 = vector.broadcast %15 : vector<1x512xf32> to vector<8x512xf32>
    %17 = arith.addf %14, %16 : vector<8x512xf32>
    %cst_11 = arith.constant 0.000000e+00 : f32
    %18 = vector.broadcast %cst_11 : f32 to vector<8x512xf32>
    %19 = arith.maximumf %17, %18 : vector<8x512xf32>
    %20 = arith.truncf %19 : vector<8x512xf32> to vector<8x512xbf16>
    %c0_12 = arith.constant 0 : index
    %c0_13 = arith.constant 0 : index
    %21 = vector.load %arg6[%c0_12, %c0_13] : memref<512x512xbf16, #tpu.memory_space<vmem>>, vector<512x512xbf16>
    %cst_14 = arith.constant dense<0.000000e+00> : vector<8x512xf32>
    %22 = tpu.matmul %12, %21, %cst_14 {dimension_numbers = #tpu.dot_dimension_numbers<[1], [0], [0], [1], [0, 0, 1, 1], [], []>} : vector<8x512xbf16>, vector<512x512xbf16>, vector<8x512xf32> -> vector<8x512xf32>
    %c0_15 = arith.constant 0 : index
    %c0_16 = arith.constant 0 : index
    %23 = vector.load %arg7[%c0_15, %c0_16] : memref<1x512xf32, #tpu.memory_space<vmem>>, vector<1x512xf32>
    %24 = vector.broadcast %23 : vector<1x512xf32> to vector<8x512xf32>
    %25 = arith.addf %22, %24 : vector<8x512xf32>
    %cst_17 = arith.constant 0.000000e+00 : f32
    %26 = vector.broadcast %cst_17 : f32 to vector<8x512xf32>
    %27 = arith.maximumf %25, %26 : vector<8x512xf32>
    %28 = arith.truncf %27 : vector<8x512xf32> to vector<8x512xbf16>
    %c0_18 = arith.constant 0 : index
    %c0_19 = arith.constant 0 : index
    %29 = vector.load %arg8[%c0_18, %c0_19] : memref<512x128xbf16, #tpu.memory_space<vmem>>, vector<512x128xbf16>
    %cst_20 = arith.constant dense<0.000000e+00> : vector<8x128xf32>
    %30 = tpu.matmul %20, %29, %cst_20 {dimension_numbers = #tpu.dot_dimension_numbers<[1], [0], [0], [1], [0, 0, 1, 1], [], []>} : vector<8x512xbf16>, vector<512x128xbf16>, vector<8x128xf32> -> vector<8x128xf32>
    %c0_21 = arith.constant 0 : index
    %c0_22 = arith.constant 0 : index
    %31 = vector.load %arg9[%c0_21, %c0_22] : memref<512x128xbf16, #tpu.memory_space<vmem>>, vector<512x128xbf16>
    %cst_23 = arith.constant dense<0.000000e+00> : vector<8x128xf32>
    %32 = tpu.matmul %28, %31, %cst_23 {dimension_numbers = #tpu.dot_dimension_numbers<[1], [0], [0], [1], [0, 0, 1, 1], [], []>} : vector<8x512xbf16>, vector<512x128xbf16>, vector<8x128xf32> -> vector<8x128xf32>
    %33 = arith.addf %30, %32 : vector<8x128xf32>
    %c0_24 = arith.constant 0 : index
    %c0_25 = arith.constant 0 : index
    %34 = vector.load %arg10[%c0_24, %c0_25] : memref<1x128xf32, #tpu.memory_space<vmem>>, vector<1x128xf32>
    %35 = vector.broadcast %34 : vector<1x128xf32> to vector<8x128xf32>
    %36 = arith.addf %33, %35 : vector<8x128xf32>
    %c0_26 = arith.constant 0 : index
    %c0_27 = arith.constant 0 : index
    %37 = vector.load %arg11[%c0_26, %c0_27] : memref<8x128xf32, #tpu.memory_space<vmem>>, vector<8x128xf32>
    tpu.vector_store %arg11[%c0_26, %c0_27], %36 {strides = array<i32>} : memref<8x128xf32, #tpu.memory_space<vmem>>, vector<8x128xf32>,
    return
  }
  func.func @transform_0(%arg0: i32) -> (i32, i32) {
    %c0_i32 = arith.constant 0 : i32
    %c0_i32_0 = arith.constant 0 : i32
    return %arg0, %c0_i32 : i32, i32
  }
  func.func @transform_1(%arg0: i32) -> (i32, i32) {
    %c0_i32 = arith.constant 0 : i32
    %c0_i32_0 = arith.constant 0 : i32
    %c0_i32_1 = arith.constant 0 : i32
    return %c0_i32, %c0_i32_0 : i32, i32
  }
  func.func @transform_2(%arg0: i32) -> (i32, i32) {
    %c0_i32 = arith.constant 0 : i32
    %c0_i32_0 = arith.constant 0 : i32
    %c0_i32_1 = arith.constant 0 : i32
    return %c0_i32, %c0_i32_0 : i32, i32
  }
  func.func @transform_3(%arg0: i32) -> (i32, i32) {
    %c0_i32 = arith.constant 0 : i32
    %c0_i32_0 = arith.constant 0 : i32
    %c0_i32_1 = arith.constant 0 : i32
    return %c0_i32, %c0_i32_0 : i32, i32
  }
  func.func @transform_4(%arg0: i32) -> (i32, i32) {
    %c0_i32 = arith.constant 0 : i32
    %c0_i32_0 = arith.constant 0 : i32
    %c0_i32_1 = arith.constant 0 : i32
    return %c0_i32, %c0_i32_0 : i32, i32
  }
  func.func @transform_5(%arg0: i32) -> (i32, i32) {
    %c0_i32 = arith.constant 0 : i32
    %c0_i32_0 = arith.constant 0 : i32
    %c0_i32_1 = arith.constant 0 : i32
    return %c0_i32, %c0_i32_0 : i32, i32
  }
  func.func @transform_6(%arg0: i32) -> (i32, i32) {
    %c0_i32 = arith.constant 0 : i32
    %c0_i32_0 = arith.constant 0 : i32
    %c0_i32_1 = arith.constant 0 : i32
    return %c0_i32, %c0_i32_0 : i32, i32
  }
  func.func @transform_7(%arg0: i32) -> (i32, i32) {
    %c0_i32 = arith.constant 0 : i32
    %c0_i32_0 = arith.constant 0 : i32
    %c0_i32_1 = arith.constant 0 : i32
    return %c0_i32, %c0_i32_0 : i32, i32
  }
  func.func @transform_8(%arg0: i32) -> (i32, i32) {
    %c0_i32 = arith.constant 0 : i32
    %c0_i32_0 = arith.constant 0 : i32
    %c0_i32_1 = arith.constant 0 : i32
    return %c0_i32, %c0_i32_0 : i32, i32
  }
  func.func @transform_9(%arg0: i32) -> (i32, i32) {
    %c0_i32 = arith.constant 0 : i32
    %c0_i32_0 = arith.constant 0 : i32
    %c0_i32_1 = arith.constant 0 : i32
    return %c0_i32, %c0_i32_0 : i32, i32
  }
  func.func @transform_10(%arg0: i32) -> (i32, i32) {
    %c0_i32 = arith.constant 0 : i32
    %c0_i32_0 = arith.constant 0 : i32
    return %arg0, %c0_i32 : i32, i32
  }
}

</mosaic_0001>

<llo_original>
// kernel: simple_ffdqn_forward.1
$region0: #{simple_ffdqn_forward.1}
  #allocation0 [shape = 'u32[]', space=smem, size = 0x4, offset = 0x4, fixed_abs, tag = 'smem constant byte address 0x4 - core index']
  #allocation1 [shape = 'u32[144,128]{1,0:T(1,128)}', space=vmem, size = 0x12000, scoped, tag = 'internal scratch']
  %s0 = inlined_call_operand.hbm [shape: f32[8,32], index: 0, kind: input, shape index: {}]
  %s1 = inlined_call_operand.hbm [shape: bf16[32,1024], index: 1, kind: input, shape index: {}]
  %s2 = inlined_call_operand.hbm [shape: f32[1,1024], index: 2, kind: input, shape index: {}]
  %s3 = inlined_call_operand.hbm [shape: bf16[512,512], index: 3, kind: input, shape index: {}]
  %s4 = inlined_call_operand.vmem [shape: f32[1,512], index: 4, kind: input, shape index: {}]
  %s5 = inlined_call_operand.hbm [shape: bf16[512,512], index: 5, kind: input, shape index: {}]
  %s6 = inlined_call_operand.hbm [shape: f32[1,512], index: 6, kind: input, shape index: {}]
  %s7 = inlined_call_operand.hbm [shape: bf16[512,128], index: 7, kind: input, shape index: {}]
  %s8 = inlined_call_operand.hbm [shape: bf16[512,128], index: 8, kind: input, shape index: {}]
  %s9 = inlined_call_operand.vmem [shape: f32[1,128], index: 9, kind: input, shape index: {}]
  %s10 = inlined_call_operand.hbm [shape: f32[8,128], index: 10, kind: output, shape index: {}]
  %s11 = sld [smem:[#allocation0]]
  $region82: #{simple_ffdqn_forward.1} parent=0
    _
  %s13 = ssub.s32 1, %s11
  %s14 = scalar_select 0, %s13, %s11
  $region1: #{simple_ffdqn_forward.1} parent=0
    #allocation2 [shape = 'u8[4096]{0}', space=vmem, size = 0x1000, scoped, tag = 'input window, operand 0, single buffered']
    #allocation3 [shape = 's32[1]{0}', space=sflag, size = 0x4, scoped, tag = 'scoped memory for simple_ffdqn_forward.1']
    #allocation4 [shape = 's32[1]{0}', space=sflag, size = 0x4, scoped, tag = 'scoped memory for simple_ffdqn_forward.1']
    #allocation5 [shape = 'u8[65536]{0}', space=vmem, size = 0x10000, scoped, tag = 'input window, operand 1, single buffered']
    #allocation6 [shape = 's32[1]{0}', space=sflag, size = 0x4, scoped, tag = 'scoped memory for simple_ffdqn_forward.1']
    #allocation7 [shape = 'u8[4096]{0}', space=vmem, size = 0x1000, scoped, tag = 'input window, operand 2, single buffered']
    #allocation8 [shape = 'u8[524288]{0}', space=vmem, size = 0x80000, scoped, tag = 'input window, operand 3, single buffered']
    #allocation9 [shape = 's32[1]{0}', space=sflag, size = 0x4, scoped, tag = 'scoped memory for simple_ffdqn_forward.1']
    #allocation10 [shape = 'u8[524288]{0}', space=vmem, size = 0x80000, scoped, tag = 'input window, operand 5, single buffered']
    #allocation11 [shape = 'u8[2048]{0}', space=vmem, size = 0x800, scoped, tag = 'input window, operand 6, single buffered']
    #allocation12 [shape = 's32[1]{0}', space=sflag, size = 0x4, scoped, tag = 'scoped memory for simple_ffdqn_forward.1']
    #allocation13 [shape = 'u8[131072]{0}', space=vmem, size = 0x20000, scoped, tag = 'input window, operand 7, single buffered']
    #allocation14 [shape = 'u8[131072]{0}', space=vmem, size = 0x20000, scoped, tag = 'input window, operand 8, single buffered']
    #allocation15 [shape = 's32[1]{0}', space=sflag, size = 0x4, scoped, tag = 'scoped memory for simple_ffdqn_forward.1']
    #allocation16 [shape = 'u8[4096]{0}', space=vmem, size = 0x1000, scoped, tag = 'output window, operand 0, single buffered']
    %15 = vsyncpa [#allocation3], 0
    %16 = vsyncpa [#allocation6], 0
    %17 = vsyncpa [#allocation9], 0
    %18 = vsyncpa [#allocation12], 0
    %19 = vsyncpa [#allocation15], 0
    %20 = vsyncpa [#allocation4], 0
    // Predicated region
    $region2: #{simple_ffdqn_forward.1} parent=1 // pred_check
      _
    $region3: #{simple_ffdqn_forward.1} parent=1 // pred_check_branch
      %22 = sbr.rel (0) target = $region5
    $region4: #{simple_ffdqn_forward.1} parent=1 // pred_region
      %s24 = ssub.s32 128, 128
      %25 = vsyncadd [#allocation3], %s24
      %s27 = sshll.u32 [#allocation2], 4
      %s28 = int_to_ptr.vmem [resolvable:$true] %s27
      %30 = dma.hbm_to_vmem [thread:$0]  %s0, 128, %s28, [#allocation3]
    $region5: #{simple_ffdqn_forward.1} parent=1 // pred_fallthru
      _
    // Predicated region
    $region6: #{simple_ffdqn_forward.1} parent=1 // pred_check
      _
    $region7: #{simple_ffdqn_forward.1} parent=1 // pred_check_branch
      %32 = sbr.rel (0) target = $region9
    $region8: #{simple_ffdqn_forward.1} parent=1 // pred_region
      %s34 = ssub.s32 2048, 2048
      %35 = vsyncadd [#allocation6], %s34
      %s36 = sshll.u32 [#allocation5], 4
      %s37 = int_to_ptr.vmem [resolvable:$true] %s36
      %42 = dma.hbm_to_vmem [thread:$0]  %s1, 2048, %s37, [#allocation6], 512, 512, 32
    $region9: #{simple_ffdqn_forward.1} parent=1 // pred_fallthru
      _
    // Predicated region
    $region10: #{simple_ffdqn_forward.1} parent=1 // pred_check
      _
    $region11: #{simple_ffdqn_forward.1} parent=1 // pred_check_branch
      %44 = sbr.rel (0) target = $region13
    $region12: #{simple_ffdqn_forward.1} parent=1 // pred_region
      %s46 = ssub.s32 128, 128
      %47 = vsyncadd [#allocation6], %s46
      %s49 = sshll.u32 [#allocation7], 4
      %s50 = int_to_ptr.vmem [resolvable:$true] %s49
      %52 = dma.hbm_to_vmem [thread:$0]  %s2, 128, %s50, [#allocation6]
    $region13: #{simple_ffdqn_forward.1} parent=1 // pred_fallthru
      _
    // Predicated region
    $region14: #{simple_ffdqn_forward.1} parent=1 // pred_check
      _
    $region15: #{simple_ffdqn_forward.1} parent=1 // pred_check_branch
      %54 = sbr.rel (0) target = $region17
    $region16: #{simple_ffdqn_forward.1} parent=1 // pred_region
      %s56 = ssub.s32 16384, 16384
      %57 = vsyncadd [#allocation9], %s56
      %s58 = sshll.u32 [#allocation8], 4
      %s59 = int_to_ptr.vmem [resolvable:$true] %s58
      %64 = dma.hbm_to_vmem [thread:$0]  %s3, 16384, %s59, [#allocation9], 256, 256, 16
    $region17: #{simple_ffdqn_forward.1} parent=1 // pred_fallthru
      _
    // Predicated region
    $region18: #{simple_ffdqn_forward.1} parent=1 // pred_check
      _
    $region19: #{simple_ffdqn_forward.1} parent=1 // pred_check_branch
      %66 = sbr.rel (0) target = $region21
    $region20: #{simple_ffdqn_forward.1} parent=1 // pred_region
      _
    $region21: #{simple_ffdqn_forward.1} parent=1 // pred_fallthru
      _
    // Predicated region
    $region22: #{simple_ffdqn_forward.1} parent=1 // pred_check
      _
    $region23: #{simple_ffdqn_forward.1} parent=1 // pred_check_branch
      %68 = sbr.rel (0) target = $region25
    $region24: #{simple_ffdqn_forward.1} parent=1 // pred_region
      %s70 = ssub.s32 16384, 16384
      %71 = vsyncadd [#allocation9], %s70
      %s72 = sshll.u32 [#allocation10], 4
      %s73 = int_to_ptr.vmem [resolvable:$true] %s72
      %78 = dma.hbm_to_vmem [thread:$0]  %s5, 16384, %s73, [#allocation9], 256, 256, 16
    $region25: #{simple_ffdqn_forward.1} parent=1 // pred_fallthru
      _
    // Predicated region
    $region26: #{simple_ffdqn_forward.1} parent=1 // pred_check
      _
    $region27: #{simple_ffdqn_forward.1} parent=1 // pred_check_branch
      %80 = sbr.rel (0) target = $region29
    $region28: #{simple_ffdqn_forward.1} parent=1 // pred_region
      %s82 = ssub.s32 64, 64
      %83 = vsyncadd [#allocation12], %s82
      %s85 = sshll.u32 [#allocation11], 4
      %s86 = int_to_ptr.vmem [resolvable:$true] %s85
      %88 = dma.hbm_to_vmem [thread:$0]  %s6, 64, %s86, [#allocation12]
    $region29: #{simple_ffdqn_forward.1} parent=1 // pred_fallthru
      _
    // Predicated region
    $region30: #{simple_ffdqn_forward.1} parent=1 // pred_check
      _
    $region31: #{simple_ffdqn_forward.1} parent=1 // pred_check_branch
      %90 = sbr.rel (0) target = $region33
    $region32: #{simple_ffdqn_forward.1} parent=1 // pred_region
      %s92 = ssub.s32 4096, 4096
      %93 = vsyncadd [#allocation12], %s92
      %s94 = sshll.u32 [#allocation13], 4
      %s95 = int_to_ptr.vmem [resolvable:$true] %s94
      %100 = dma.hbm_to_vmem [thread:$0]  %s7, 4096, %s95, [#allocation12], 64, 64, 4
    $region33: #{simple_ffdqn_forward.1} parent=1 // pred_fallthru
      _
    // Predicated region
    $region34: #{simple_ffdqn_forward.1} parent=1 // pred_check
      _
    $region35: #{simple_ffdqn_forward.1} parent=1 // pred_check_branch
      %102 = sbr.rel (0) target = $region37
    $region36: #{simple_ffdqn_forward.1} parent=1 // pred_region
      %s104 = ssub.s32 4096, 4096
      %105 = vsyncadd [#allocation15], %s104
      %s106 = sshll.u32 [#allocation14], 4
      %s107 = int_to_ptr.vmem [resolvable:$true] %s106
      %112 = dma.hbm_to_vmem [thread:$0]  %s8, 4096, %s107, [#allocation15], 64, 64, 4
    $region37: #{simple_ffdqn_forward.1} parent=1 // pred_fallthru
      _
    // Predicated region
    $region38: #{simple_ffdqn_forward.1} parent=1 // pred_check
      _
    $region39: #{simple_ffdqn_forward.1} parent=1 // pred_check_branch
      %114 = sbr.rel (0) target = $region41
    $region40: #{simple_ffdqn_forward.1} parent=1 // pred_region
      _
    $region41: #{simple_ffdqn_forward.1} parent=1 // pred_fallthru
      _
    // Predicated region
    $region42: #{simple_ffdqn_forward.1} parent=1 // pred_check
      _
    $region43: #{simple_ffdqn_forward.1} parent=1 // pred_check_branch
      %116 = sbr.rel (0) target = $region45
    $region44: #{simple_ffdqn_forward.1} parent=1 // pred_region
      %117 = dma.done [#allocation3], 128
    $region45: #{simple_ffdqn_forward.1} parent=1 // pred_fallthru
      _
    // Predicated region
    $region46: #{simple_ffdqn_forward.1} parent=1 // pred_check
      _
    $region47: #{simple_ffdqn_forward.1} parent=1 // pred_check_branch
      %119 = sbr.rel (0) target = $region49
    $region48: #{simple_ffdqn_forward.1} parent=1 // pred_region
      %120 = dma.done [#allocation6], 2048
    $region49: #{simple_ffdqn_forward.1} parent=1 // pred_fallthru
      _
    // Predicated region
    $region50: #{simple_ffdqn_forward.1} parent=1 // pred_check
      _
    $region51: #{simple_ffdqn_forward.1} parent=1 // pred_check_branch
      %122 = sbr.rel (0) target = $region53
    $region52: #{simple_ffdqn_forward.1} parent=1 // pred_region
      %123 = dma.done [#allocation6], 128
    $region53: #{simple_ffdqn_forward.1} parent=1 // pred_fallthru
      _
    // Predicated region
    $region54: #{simple_ffdqn_forward.1} parent=1 // pred_check
      _
    $region55: #{simple_ffdqn_forward.1} parent=1 // pred_check_branch
      %125 = sbr.rel (0) target = $region57
    $region56: #{simple_ffdqn_forward.1} parent=1 // pred_region
      %126 = dma.done [#allocation9], 16384
    $region57: #{simple_ffdqn_forward.1} parent=1 // pred_fallthru
      _
    // Predicated region
    $region58: #{simple_ffdqn_forward.1} parent=1 // pred_check
      _
    $region59: #{simple_ffdqn_forward.1} parent=1 // pred_check_branch
      %128 = sbr.rel (0) target = $region61
    $region60: #{simple_ffdqn_forward.1} parent=1 // pred_region
      %129 = dma.done [#allocation9], 16384
    $region61: #{simple_ffdqn_forward.1} parent=1 // pred_fallthru
      _
    // Predicated region
    $region62: #{simple_ffdqn_forward.1} parent=1 // pred_check
      _
    $region63: #{simple_ffdqn_forward.1} parent=1 // pred_check_branch
      %131 = sbr.rel (0) target = $region65
    $region64: #{simple_ffdqn_forward.1} parent=1 // pred_region
      %132 = dma.done [#allocation12], 64
    $region65: #{simple_ffdqn_forward.1} parent=1 // pred_fallthru
      _
    // Predicated region
    $region66: #{simple_ffdqn_forward.1} parent=1 // pred_check
      _
    $region67: #{simple_ffdqn_forward.1} parent=1 // pred_check_branch
      %134 = sbr.rel (0) target = $region69
    $region68: #{simple_ffdqn_forward.1} parent=1 // pred_region
      %135 = dma.done [#allocation12], 4096
    $region69: #{simple_ffdqn_forward.1} parent=1 // pred_fallthru
      _
    // Predicated region
    $region70: #{simple_ffdqn_forward.1} parent=1 // pred_check
      _
    $region71: #{simple_ffdqn_forward.1} parent=1 // pred_check_branch
      %137 = sbr.rel (0) target = $region73
    $region72: #{simple_ffdqn_forward.1} parent=1 // pred_region
      %138 = dma.done [#allocation15], 4096
    $region73: #{simple_ffdqn_forward.1} parent=1 // pred_fallthru
      _
    %v140 = vld [vmem:[#allocation2] sm:$0xff]
    %v141 = vpack.c.bf16 %v140, %v140
    %v142 = vld [vmem:[#allocation5] sm:$0xff]
    %v143 = vld [vmem:[#allocation5 + $0x8] sm:$0xff]
    %v144 = vld [vmem:[#allocation5 + $0x10] sm:$0xff]
    %v145 = vld [vmem:[#allocation5 + $0x18] sm:$0xff]
    %v146 = vld [vmem:[#allocation5 + $0x20] sm:$0xff]
    %v147 = vld [vmem:[#allocation5 + $0x28] sm:$0xff]
    %v148 = vld [vmem:[#allocation5 + $0x30] sm:$0xff]
    %v149 = vld [vmem:[#allocation5 + $0x38] sm:$0xff]
    %v150 = vld [vmem:[#allocation5 + $0x40] sm:$0xff]
    %v151 = vld [vmem:[#allocation5 + $0x48] sm:$0xff]
    %v152 = vld [vmem:[#allocation5 + $0x50] sm:$0xff]
    %v153 = vld [vmem:[#allocation5 + $0x58] sm:$0xff]
    %v154 = vld [vmem:[#allocation5 + $0x60] sm:$0xff]
    %v155 = vld [vmem:[#allocation5 + $0x68] sm:$0xff]
    %v156 = vld [vmem:[#allocation5 + $0x70] sm:$0xff]
    %v157 = vld [vmem:[#allocation5 + $0x78] sm:$0xff]
    %v158 = vld [vmem:[#allocation7] sm:$0xff]
    %v160 = vlaneseq
    %v161 = vshrl.u32 %v160, 7
    %v162 = vsub.s32 0, %v161
    %v163 = vrot.slane %v158, %v162
    %v164 = vlaneseq
    %v165 = vshrl.u32 %v164, 7
    %v166 = vsub.s32 1, %v165
    %v167 = vrot.slane %v158, %v166
    %v168 = vlaneseq
    %v169 = vshrl.u32 %v168, 7
    %v170 = vsub.s32 2, %v169
    %v171 = vrot.slane %v158, %v170
    %v172 = vlaneseq
    %v173 = vshrl.u32 %v172, 7
    %v174 = vsub.s32 3, %v173
    %v175 = vrot.slane %v158, %v174
    %v176 = vlaneseq
    %v177 = vshrl.u32 %v176, 7
    %v178 = vsub.s32 4, %v177
    %v179 = vrot.slane %v158, %v178
    %v180 = vlaneseq
    %v181 = vshrl.u32 %v180, 7
    %v182 = vsub.s32 5, %v181
    %v183 = vrot.slane %v158, %v182
    %v184 = vlaneseq
    %v185 = vshrl.u32 %v184, 7
    %v186 = vsub.s32 6, %v185
    %v187 = vrot.slane %v158, %v186
    %v188 = vlaneseq
    %v189 = vshrl.u32 %v188, 7
    %v190 = vsub.s32 7, %v189
    %v191 = vrot.slane %v158, %v190
    %v216 = vunpack.c.l.b16 %v142
    %v217 = vunpack.c.h.b16 %v142
    %v218 = vunpack.c.l.b16 %v143
    %v219 = vunpack.c.h.b16 %v143
    %v220 = vunpack.c.l.b16 %v144
    %v221 = vunpack.c.h.b16 %v144
    %v222 = vunpack.c.l.b16 %v145
    %v223 = vunpack.c.h.b16 %v145
    %v224 = vunpack.c.l.b16 %v146
    %v225 = vunpack.c.h.b16 %v146
    %v226 = vunpack.c.l.b16 %v147
    %v227 = vunpack.c.h.b16 %v147
    %v228 = vunpack.c.l.b16 %v148
    %v229 = vunpack.c.h.b16 %v148
    %v230 = vunpack.c.l.b16 %v149
    %v231 = vunpack.c.h.b16 %v149
    %v232 = vunpack.c.l.b16 %v150
    %v233 = vunpack.c.h.b16 %v150
    %v234 = vunpack.c.l.b16 %v151
    %v235 = vunpack.c.h.b16 %v151
    %v236 = vunpack.c.l.b16 %v152
    %v237 = vunpack.c.h.b16 %v152
    %v238 = vunpack.c.l.b16 %v153
    %v239 = vunpack.c.h.b16 %v153
    %v240 = vunpack.c.l.b16 %v154
    %v241 = vunpack.c.h.b16 %v154
    %v242 = vunpack.c.l.b16 %v155
    %v243 = vunpack.c.h.b16 %v155
    %v244 = vunpack.c.l.b16 %v156
    %v245 = vunpack.c.h.b16 %v156
    %v246 = vunpack.c.l.b16 %v157
    %v247 = vunpack.c.h.b16 %v157
    %v248 = vpack.c.b16 %v224, %v216
    %v249 = vpack.c.b16 %v225, %v217
    %v250 = vpack.c.b16 %v226, %v218
    %v251 = vpack.c.b16 %v227, %v219
    %v252 = vpack.c.b16 %v228, %v220
    %v253 = vpack.c.b16 %v229, %v221
    %v254 = vpack.c.b16 %v230, %v222
    %v255 = vpack.c.b16 %v231, %v223
    %v256 = vpack.c.b16 %v240, %v232
    %v257 = vpack.c.b16 %v241, %v233
    %v258 = vpack.c.b16 %v242, %v234
    %v259 = vpack.c.b16 %v243, %v235
    %v260 = vpack.c.b16 %v244, %v236
    %v261 = vpack.c.b16 %v245, %v237
    %v262 = vpack.c.b16 %v246, %v238
    %v263 = vpack.c.b16 %v247, %v239
    %vm280 = vcmask 261120
    %v282 = vsel %vm280, %v141, 0
    %284 = vmatprep.subr.bf16.mxu0 0
    %285 = vmatpush1.bf16.msra.mxu0 0
    %286 = vmatprep.subr.bf16.mxu0 0
    %287 = vmatpush1.bf16.msra.mxu0 0
    %288 = vmatprep.subr.bf16.mxu0 0
    %289 = vmatpush1.bf16.msra.mxu0 0
    %290 = vmatprep.subr.bf16.mxu0 0
    %291 = vmatpush1.bf16.msra.mxu0 0
    %292 = vmatprep.subr.bf16.mxu0 0
    %293 = vmatpush1.bf16.msra.mxu0 0
    %294 = vmatprep.subr.bf16.mxu0 0
    %295 = vmatpush1.bf16.msra.mxu0 0
    %296 = vmatprep.subr.bf16.mxu0 %v257
    %297 = vmatpush1.bf16.msra.mxu0 %v256
    %298 = vmatprep.subr.bf16.mxu0 %v249
    %299 = vmatpush1.bf16.msra.mxu0 %v248
    %300 = vmatprep.subr.bf16.mxu0 0
    %301 = vmatpush2.bf16.msra.mxu0 0
    %302 = vmatprep.subr.bf16.mxu0 0
    %303 = vmatpush2.bf16.msra.mxu0 0
    %304 = vmatprep.subr.bf16.mxu0 0
    %305 = vmatpush2.bf16.msra.mxu0 0
    %306 = vmatprep.subr.bf16.mxu0 0
    %307 = vmatpush2.bf16.msra.mxu0 0
    %308 = vmatprep.subr.bf16.mxu0 0
    %309 = vmatpush2.bf16.msra.mxu0 0
    %310 = vmatprep.subr.bf16.mxu0 0
    %311 = vmatpush2.bf16.msra.mxu0 0
    %312 = vmatprep.subr.bf16.mxu0 0
    %313 = vmatpush2.bf16.msra.mxu0 0
    %314 = vmatprep.subr.bf16.mxu0 0
    %315 = vmatpush2.bf16.msra.mxu0 0
    %316 = vmatprep.mubr.bf16.mxu0 0
    %317 = vmatmul.mubr.bf16.gmra.mxu0 %v282
    %v318 = vpop.f32.mrf.mxu0
    %v319 = vadd.f32 %v163, %v318
    %v320 = vpop.f32.mrf.mxu0
    %v321 = vadd.f32 %v167, %v320
    %v322 = vpop.f32.mrf.mxu0
    %v323 = vpop.f32.mrf.mxu0
    %324 = vdwg.mxu0
    %325 = vmatprep.subr.bf16.mxu0 0
    %326 = vmatpush1.bf16.msra.mxu0 0
    %327 = vmatprep.subr.bf16.mxu0 0
    %328 = vmatpush1.bf16.msra.mxu0 0
    %329 = vmatprep.subr.bf16.mxu0 0
    %330 = vmatpush1.bf16.msra.mxu0 0
    %331 = vmatprep.subr.bf16.mxu0 0
    %332 = vmatpush1.bf16.msra.mxu0 0
    %333 = vmatprep.subr.bf16.mxu0 0
    %334 = vmatpush1.bf16.msra.mxu0 0
    %335 = vmatprep.subr.bf16.mxu0 0
    %336 = vmatpush1.bf16.msra.mxu0 0
    %337 = vmatprep.subr.bf16.mxu0 %v259
    %338 = vmatpush1.bf16.msra.mxu0 %v258
    %339 = vmatprep.subr.bf16.mxu0 %v251
    %340 = vmatpush1.bf16.msra.mxu0 %v250
    %341 = vmatprep.subr.bf16.mxu0 0
    %342 = vmatpush2.bf16.msra.mxu0 0
    %343 = vmatprep.subr.bf16.mxu0 0
    %344 = vmatpush2.bf16.msra.mxu0 0
    %345 = vmatprep.subr.bf16.mxu0 0
    %346 = vmatpush2.bf16.msra.mxu0 0
    %347 = vmatprep.subr.bf16.mxu0 0
    %348 = vmatpush2.bf16.msra.mxu0 0
    %349 = vmatprep.subr.bf16.mxu0 0
    %350 = vmatpush2.bf16.msra.mxu0 0
    %351 = vmatprep.subr.bf16.mxu0 0
    %352 = vmatpush2.bf16.msra.mxu0 0
    %353 = vmatprep.subr.bf16.mxu0 0
    %354 = vmatpush2.bf16.msra.mxu0 0
    %355 = vmatprep.subr.bf16.mxu0 0
    %356 = vmatpush2.bf16.msra.mxu0 0
    %357 = vmatprep.mubr.bf16.mxu0 0
    %358 = vmatmul.mubr.bf16.gmra.mxu0 %v282
    %v359 = vpop.f32.mrf.mxu0
    %v360 = vadd.f32 %v171, %v359
    %v361 = vpop.f32.mrf.mxu0
    %v362 = vadd.f32 %v175, %v361
    %v363 = vpop.f32.mrf.mxu0
    %v364 = vpop.f32.mrf.mxu0
    %365 = vdwg.mxu0
    %366 = vmatprep.subr.bf16.mxu0 0
    %367 = vmatpush1.bf16.msra.mxu0 0
    %368 = vmatprep.subr.bf16.mxu0 0
    %369 = vmatpush1.bf16.msra.mxu0 0
    %370 = vmatprep.subr.bf16.mxu0 0
    %371 = vmatpush1.bf16.msra.mxu0 0
    %372 = vmatprep.subr.bf16.mxu0 0
    %373 = vmatpush1.bf16.msra.mxu0 0
    %374 = vmatprep.subr.bf16.mxu0 0
    %375 = vmatpush1.bf16.msra.mxu0 0
    %376 = vmatprep.subr.bf16.mxu0 0
    %377 = vmatpush1.bf16.msra.mxu0 0
    %378 = vmatprep.subr.bf16.mxu0 %v261
    %379 = vmatpush1.bf16.msra.mxu0 %v260
    %380 = vmatprep.subr.bf16.mxu0 %v253
    %381 = vmatpush1.bf16.msra.mxu0 %v252
    %382 = vmatprep.subr.bf16.mxu0 0
    %383 = vmatpush2.bf16.msra.mxu0 0
    %384 = vmatprep.subr.bf16.mxu0 0
    %385 = vmatpush2.bf16.msra.mxu0 0
    %386 = vmatprep.subr.bf16.mxu0 0
    %387 = vmatpush2.bf16.msra.mxu0 0
    %388 = vmatprep.subr.bf16.mxu0 0
    %389 = vmatpush2.bf16.msra.mxu0 0
    %390 = vmatprep.subr.bf16.mxu0 0
    %391 = vmatpush2.bf16.msra.mxu0 0
    %392 = vmatprep.subr.bf16.mxu0 0
    %393 = vmatpush2.bf16.msra.mxu0 0
    %394 = vmatprep.subr.bf16.mxu0 0
    %395 = vmatpush2.bf16.msra.mxu0 0
    %396 = vmatprep.subr.bf16.mxu0 0
    %397 = vmatpush2.bf16.msra.mxu0 0
    %398 = vmatprep.mubr.bf16.mxu0 0
    %399 = vmatmul.mubr.bf16.gmra.mxu0 %v282
    %v400 = vpop.f32.mrf.mxu0
    %v401 = vadd.f32 %v179, %v400
    %v402 = vpop.f32.mrf.mxu0
    %v403 = vadd.f32 %v183, %v402
    %v404 = vpop.f32.mrf.mxu0
    %v405 = vpop.f32.mrf.mxu0
    %406 = vdwg.mxu0
    %407 = vmatprep.subr.bf16.mxu0 0
    %408 = vmatpush1.bf16.msra.mxu0 0
    %409 = vmatprep.subr.bf16.mxu0 0
    %410 = vmatpush1.bf16.msra.mxu0 0
    %411 = vmatprep.subr.bf16.mxu0 0
    %412 = vmatpush1.bf16.msra.mxu0 0
    %413 = vmatprep.subr.bf16.mxu0 0
    %414 = vmatpush1.bf16.msra.mxu0 0
    %415 = vmatprep.subr.bf16.mxu0 0
    %416 = vmatpush1.bf16.msra.mxu0 0
    %417 = vmatprep.subr.bf16.mxu0 0
    %418 = vmatpush1.bf16.msra.mxu0 0
    %419 = vmatprep.subr.bf16.mxu0 %v263
    %420 = vmatpush1.bf16.msra.mxu0 %v262
    %421 = vmatprep.subr.bf16.mxu0 %v255
    %422 = vmatpush1.bf16.msra.mxu0 %v254
    %423 = vmatprep.subr.bf16.mxu0 0
    %424 = vmatpush2.bf16.msra.mxu0 0
    %425 = vmatprep.subr.bf16.mxu0 0
    %426 = vmatpush2.bf16.msra.mxu0 0
    %427 = vmatprep.subr.bf16.mxu0 0
    %428 = vmatpush2.bf16.msra.mxu0 0
    %429 = vmatprep.subr.bf16.mxu0 0
    %430 = vmatpush2.bf16.msra.mxu0 0
    %431 = vmatprep.subr.bf16.mxu0 0
    %432 = vmatpush2.bf16.msra.mxu0 0
    %433 = vmatprep.subr.bf16.mxu0 0
    %434 = vmatpush2.bf16.msra.mxu0 0
    %435 = vmatprep.subr.bf16.mxu0 0
    %436 = vmatpush2.bf16.msra.mxu0 0
    %437 = vmatprep.subr.bf16.mxu0 0
    %438 = vmatpush2.bf16.msra.mxu0 0
    %439 = vmatprep.mubr.bf16.mxu0 0
    %440 = vmatmul.mubr.bf16.gmra.mxu0 %v282
    %v441 = vpop.f32.mrf.mxu0
    %v442 = vadd.f32 %v187, %v441
    %v443 = vpop.f32.mrf.mxu0
    %v444 = vadd.f32 %v191, %v443
    %v445 = vpop.f32.mrf.mxu0
    %v446 = vpop.f32.mrf.mxu0
    %447 = vdwg.mxu0
    %v448 = vmax.f32 %v319, 0.0
    %v449 = vmax.f32 %v321, 0.0
    %v450 = vmax.f32 %v360, 0.0
    %v451 = vmax.f32 %v362, 0.0
    %v452 = vmax.f32 %v401, 0.0
    %v453 = vmax.f32 %v403, 0.0
    %v454 = vmax.f32 %v442, 0.0
    %v455 = vmax.f32 %v444, 0.0
    %v456 = vpack.c.bf16 %v448, %v448
    %v457 = vpack.c.bf16 %v449, %v449
    %v458 = vpack.c.bf16 %v450, %v450
    %v459 = vpack.c.bf16 %v451, %v451
    %v460 = vpack.c.bf16 %v452, %v452
    %v461 = vpack.c.bf16 %v453, %v453
    %v462 = vpack.c.bf16 %v454, %v454
    %v463 = vpack.c.bf16 %v455, %v455
    %v464 = vld [vmem:[#allocation8] sm:$0xff]
    %v465 = vld [vmem:[#allocation8 + $0x8] sm:$0xff]
    %v466 = vld [vmem:[#allocation8 + $0x10] sm:$0xff]
    %v467 = vld [vmem:[#allocation8 + $0x18] sm:$0xff]
    %v468 = vld [vmem:[#allocation8 + $0x20] sm:$0xff]
    %v469 = vld [vmem:[#allocation8 + $0x28] sm:$0xff]
    %v470 = vld [vmem:[#allocation8 + $0x30] sm:$0xff]
    %v471 = vld [vmem:[#allocation8 + $0x38] sm:$0xff]
    %v472 = vld [vmem:[#allocation8 + $0x40] sm:$0xff]
    %v473 = vld [vmem:[#allocation8 + $0x48] sm:$0xff]
    %v474 = vld [vmem:[#allocation8 + $0x50] sm:$0xff]
    %v475 = vld [vmem:[#allocation8 + $0x58] sm:$0xff]
    %v476 = vld [vmem:[#allocation8 + $0x60] sm:$0xff]
    %v477 = vld [vmem:[#allocation8 + $0x68] sm:$0xff]
    %v478 = vld [vmem:[#allocation8 + $0x70] sm:$0xff]
    %v479 = vld [vmem:[#allocation8 + $0x78] sm:$0xff]
    %v480 = vld [vmem:[#allocation8 + $0x80] sm:$0xff]
    %v481 = vld [vmem:[#allocation8 + $0x88] sm:$0xff]
    %v482 = vld [vmem:[#allocation8 + $0x90] sm:$0xff]
    %v483 = vld [vmem:[#allocation8 + $0x98] sm:$0xff]
    %v484 = vld [vmem:[#allocation8 + $0xa0] sm:$0xff]
    %v485 = vld [vmem:[#allocation8 + $0xa8] sm:$0xff]
    %v486 = vld [vmem:[#allocation8 + $0xb0] sm:$0xff]
    %v487 = vld [vmem:[#allocation8 + $0xb8] sm:$0xff]
    %v488 = vld [vmem:[#allocation8 + $0xc0] sm:$0xff]
    %v489 = vld [vmem:[#allocation8 + $0xc8] sm:$0xff]
    %v490 = vld [vmem:[#allocation8 + $0xd0] sm:$0xff]
    %v491 = vld [vmem:[#allocation8 + $0xd8] sm:$0xff]
    %v492 = vld [vmem:[#allocation8 + $0xe0] sm:$0xff]
    %v493 = vld [vmem:[#allocation8 + $0xe8] sm:$0xff]
    %v494 = vld [vmem:[#allocation8 + $0xf0] sm:$0xff]
    %v495 = vld [vmem:[#allocation8 + $0xf8] sm:$0xff]
    %v496 = vld [vmem:[#allocation8 + $0x100] sm:$0xff]
    %v497 = vld [vmem:[#allocation8 + $0x108] sm:$0xff]
    %v498 = vld [vmem:[#allocation8 + $0x110] sm:$0xff]
    %v499 = vld [vmem:[#allocation8 + $0x118] sm:$0xff]
    %v500 = vld [vmem:[#allocation8 + $0x120] sm:$0xff]
    %v501 = vld [vmem:[#allocation8 + $0x128] sm:$0xff]
    %v502 = vld [vmem:[#allocation8 + $0x130] sm:$0xff]
    %v503 = vld [vmem:[#allocation8 + $0x138] sm:$0xff]
    %v504 = vld [vmem:[#allocation8 + $0x140] sm:$0xff]
    %v505 = vld [vmem:[#allocation8 + $0x148] sm:$0xff]
    %v506 = vld [vmem:[#allocation8 + $0x150] sm:$0xff]
    %v507 = vld [vmem:[#allocation8 + $0x158] sm:$0xff]
    %v508 = vld [vmem:[#allocation8 + $0x160] sm:$0xff]
    %v509 = vld [vmem:[#allocation8 + $0x168] sm:$0xff]
    %v510 = vld [vmem:[#allocation8 + $0x170] sm:$0xff]
    %v511 = vld [vmem:[#allocation8 + $0x178] sm:$0xff]
    %v512 = vld [vmem:[#allocation8 + $0x180] sm:$0xff]
    %v513 = vld [vmem:[#allocation8 + $0x188] sm:$0xff]
    %v514 = vld [vmem:[#allocation8 + $0x190] sm:$0xff]
    %v515 = vld [vmem:[#allocation8 + $0x198] sm:$0xff]
    %v516 = vld [vmem:[#allocation8 + $0x1a0] sm:$0xff]
    %v517 = vld [vmem:[#allocation8 + $0x1a8] sm:$0xff]
    %v518 = vld [vmem:[#allocation8 + $0x1b0] sm:$0xff]
    %v519 = vld [vmem:[#allocation8 + $0x1b8] sm:$0xff]
    %v520 = vld [vmem:[#allocation8 + $0x1c0] sm:$0xff]
    %v521 = vld [vmem:[#allocation8 + $0x1c8] sm:$0xff]
    %v522 = vld [vmem:[#allocation8 + $0x1d0] sm:$0xff]
    %v523 = vld [vmem:[#allocation8 + $0x1d8] sm:$0xff]
    %v524 = vld [vmem:[#allocation8 + $0x1e0] sm:$0xff]
    %v525 = vld [vmem:[#allocation8 + $0x1e8] sm:$0xff]
    %v526 = vld [vmem:[#allocation8 + $0x1f0] sm:$0xff]
    %v527 = vld [vmem:[#allocation8 + $0x1f8] sm:$0xff]
    %v528 = vld [vmem:[#allocation8 + $0x200] sm:$0xff]
    %v529 = vld [vmem:[#allocation8 + $0x208] sm:$0xff]
    %v530 = vld [vmem:[#allocation8 + $0x210] sm:$0xff]
    %v531 = vld [vmem:[#allocation8 + $0x218] sm:$0xff]
    %v532 = vld [vmem:[#allocation8 + $0x220] sm:$0xff]
    %v533 = vld [vmem:[#allocation8 + $0x228] sm:$0xff]
    %v534 = vld [vmem:[#allocation8 + $0x230] sm:$0xff]
    %v535 = vld [vmem:[#allocation8 + $0x238] sm:$0xff]
    %v536 = vld [vmem:[#allocation8 + $0x240] sm:$0xff]
    %v537 = vld [vmem:[#allocation8 + $0x248] sm:$0xff]
    %v538 = vld [vmem:[#allocation8 + $0x250] sm:$0xff]
    %v539 = vld [vmem:[#allocation8 + $0x258] sm:$0xff]
    %v540 = vld [vmem:[#allocation8 + $0x260] sm:$0xff]
    %v541 = vld [vmem:[#allocation8 + $0x268] sm:$0xff]
    %v542 = vld [vmem:[#allocation8 + $0x270] sm:$0xff]
    %v543 = vld [vmem:[#allocation8 + $0x278] sm:$0xff]
    %v544 = vld [vmem:[#allocation8 + $0x280] sm:$0xff]
    %v545 = vld [vmem:[#allocation8 + $0x288] sm:$0xff]
    %v546 = vld [vmem:[#allocation8 + $0x290] sm:$0xff]
    %v547 = vld [vmem:[#allocation8 + $0x298] sm:$0xff]
    %v548 = vld [vmem:[#allocation8 + $0x2a0] sm:$0xff]
    %v549 = vld [vmem:[#allocation8 + $0x2a8] sm:$0xff]
    %v550 = vld [vmem:[#allocation8 + $0x2b0] sm:$0xff]
    %v551 = vld [vmem:[#allocation8 + $0x2b8] sm:$0xff]
    %v552 = vld [vmem:[#allocation8 + $0x2c0] sm:$0xff]
    %v553 = vld [vmem:[#allocation8 + $0x2c8] sm:$0xff]
    %v554 = vld [vmem:[#allocation8 + $0x2d0] sm:$0xff]
    %v555 = vld [vmem:[#allocation8 + $0x2d8] sm:$0xff]
    %v556 = vld [vmem:[#allocation8 + $0x2e0] sm:$0xff]
    %v557 = vld [vmem:[#allocation8 + $0x2e8] sm:$0xff]
    %v558 = vld [vmem:[#allocation8 + $0x2f0] sm:$0xff]
    %v559 = vld [vmem:[#allocation8 + $0x2f8] sm:$0xff]
    %v560 = vld [vmem:[#allocation8 + $0x300] sm:$0xff]
    %v561 = vld [vmem:[#allocation8 + $0x308] sm:$0xff]
    %v562 = vld [vmem:[#allocation8 + $0x310] sm:$0xff]
    %v563 = vld [vmem:[#allocation8 + $0x318] sm:$0xff]
    %v564 = vld [vmem:[#allocation8 + $0x320] sm:$0xff]
    %v565 = vld [vmem:[#allocation8 + $0x328] sm:$0xff]
    %v566 = vld [vmem:[#allocation8 + $0x330] sm:$0xff]
    %v567 = vld [vmem:[#allocation8 + $0x338] sm:$0xff]
    %v568 = vld [vmem:[#allocation8 + $0x340] sm:$0xff]
    %v569 = vld [vmem:[#allocation8 + $0x348] sm:$0xff]
    %v570 = vld [vmem:[#allocation8 + $0x350] sm:$0xff]
    %v571 = vld [vmem:[#allocation8 + $0x358] sm:$0xff]
    %v572 = vld [vmem:[#allocation8 + $0x360] sm:$0xff]
    %v573 = vld [vmem:[#allocation8 + $0x368] sm:$0xff]
    %v574 = vld [vmem:[#allocation8 + $0x370] sm:$0xff]
    %v575 = vld [vmem:[#allocation8 + $0x378] sm:$0xff]
    %v576 = vld [vmem:[#allocation8 + $0x380] sm:$0xff]
    %v577 = vld [vmem:[#allocation8 + $0x388] sm:$0xff]
    %v578 = vld [vmem:[#allocation8 + $0x390] sm:$0xff]
    %v579 = vld [vmem:[#allocation8 + $0x398] sm:$0xff]
    %v580 = vld [vmem:[#allocation8 + $0x3a0] sm:$0xff]
    %v581 = vld [vmem:[#allocation8 + $0x3a8] sm:$0xff]
    %v582 = vld [vmem:[#allocation8 + $0x3b0] sm:$0xff]
    %v583 = vld [vmem:[#allocation8 + $0x3b8] sm:$0xff]
    %v584 = vld [vmem:[#allocation8 + $0x3c0] sm:$0xff]
    %v585 = vld [vmem:[#allocation8 + $0x3c8] sm:$0xff]
    %v586 = vld [vmem:[#allocation8 + $0x3d0] sm:$0xff]
    %v587 = vld [vmem:[#allocation8 + $0x3d8] sm:$0xff]
    %v588 = vld [vmem:[#allocation8 + $0x3e0] sm:$0xff]
    %v589 = vld [vmem:[#allocation8 + $0x3e8] sm:$0xff]
    %v590 = vld [vmem:[#allocation8 + $0x3f0] sm:$0xff]
    %v591 = vld [vmem:[#allocation8 + $0x3f8] sm:$0xff]
    %v592 = vld [vmem:[%s4] sm:$0xf]
    %v594 = vlaneseq
    %v595 = vshrl.u32 %v594, 7
    %v596 = vsub.s32 0, %v595
    %v597 = vrot.slane %v592, %v596
    %v598 = vlaneseq
    %v599 = vshrl.u32 %v598, 7
    %v600 = vsub.s32 1, %v599
    %v601 = vrot.slane %v592, %v600
    %v602 = vlaneseq
    %v603 = vshrl.u32 %v602, 7
    %v604 = vsub.s32 2, %v603
    %v605 = vrot.slane %v592, %v604
    %v606 = vlaneseq
    %v607 = vshrl.u32 %v606, 7
    %v608 = vsub.s32 3, %v607
    %v609 = vrot.slane %v592, %v608
    %v742 = vunpack.c.l.b16 %v464
    %v743 = vunpack.c.h.b16 %v464
    %v744 = vunpack.c.l.b16 %v465
    %v745 = vunpack.c.h.b16 %v465
    %v746 = vunpack.c.l.b16 %v466
    %v747 = vunpack.c.h.b16 %v466
    %v748 = vunpack.c.l.b16 %v467
    %v749 = vunpack.c.h.b16 %v467
    %v750 = vunpack.c.l.b16 %v468
    %v751 = vunpack.c.h.b16 %v468
    %v752 = vunpack.c.l.b16 %v469
    %v753 = vunpack.c.h.b16 %v469
    %v754 = vunpack.c.l.b16 %v470
    %v755 = vunpack.c.h.b16 %v470
    %v756 = vunpack.c.l.b16 %v471
    %v757 = vunpack.c.h.b16 %v471
    %v758 = vunpack.c.l.b16 %v472
    %v759 = vunpack.c.h.b16 %v472
    %v760 = vunpack.c.l.b16 %v473
    %v761 = vunpack.c.h.b16 %v473
    %v762 = vunpack.c.l.b16 %v474
    %v763 = vunpack.c.h.b16 %v474
    %v764 = vunpack.c.l.b16 %v475
    %v765 = vunpack.c.h.b16 %v475
    %v766 = vunpack.c.l.b16 %v476
    %v767 = vunpack.c.h.b16 %v476
    %v768 = vunpack.c.l.b16 %v477
    %v769 = vunpack.c.h.b16 %v477
    %v770 = vunpack.c.l.b16 %v478
    %v771 = vunpack.c.h.b16 %v478
    %v772 = vunpack.c.l.b16 %v479
    %v773 = vunpack.c.h.b16 %v479
    %v774 = vunpack.c.l.b16 %v480
    %v775 = vunpack.c.h.b16 %v480
    %v776 = vunpack.c.l.b16 %v481
    %v777 = vunpack.c.h.b16 %v481
    %v778 = vunpack.c.l.b16 %v482
    %v779 = vunpack.c.h.b16 %v482
    %v780 = vunpack.c.l.b16 %v483
    %v781 = vunpack.c.h.b16 %v483
    %v782 = vunpack.c.l.b16 %v484
    %v783 = vunpack.c.h.b16 %v484
    %v784 = vunpack.c.l.b16 %v485
    %v785 = vunpack.c.h.b16 %v485
    %v786 = vunpack.c.l.b16 %v486
    %v787 = vunpack.c.h.b16 %v486
    %v788 = vunpack.c.l.b16 %v487
    %v789 = vunpack.c.h.b16 %v487
    %v790 = vunpack.c.l.b16 %v488
    %v791 = vunpack.c.h.b16 %v488
    %v792 = vunpack.c.l.b16 %v489
    %v793 = vunpack.c.h.b16 %v489
    %v794 = vunpack.c.l.b16 %v490
    %v795 = vunpack.c.h.b16 %v490
    %v796 = vunpack.c.l.b16 %v491
    %v797 = vunpack.c.h.b16 %v491
    %v798 = vunpack.c.l.b16 %v492
    %v799 = vunpack.c.h.b16 %v492
    %v800 = vunpack.c.l.b16 %v493
    %v801 = vunpack.c.h.b16 %v493
    %v802 = vunpack.c.l.b16 %v494
    %v803 = vunpack.c.h.b16 %v494
    %v804 = vunpack.c.l.b16 %v495
    %v805 = vunpack.c.h.b16 %v495
    %v806 = vunpack.c.l.b16 %v496
    %v807 = vunpack.c.h.b16 %v496
    %v808 = vunpack.c.l.b16 %v497
    %v809 = vunpack.c.h.b16 %v497
    %v810 = vunpack.c.l.b16 %v498
    %v811 = vunpack.c.h.b16 %v498
    %v812 = vunpack.c.l.b16 %v499
    %v813 = vunpack.c.h.b16 %v499
    %v814 = vunpack.c.l.b16 %v500
    %v815 = vunpack.c.h.b16 %v500
    %v816 = vunpack.c.l.b16 %v501
    %v817 = vunpack.c.h.b16 %v501
    %v818 = vunpack.c.l.b16 %v502
    %v819 = vunpack.c.h.b16 %v502
    %v820 = vunpack.c.l.b16 %v503
    %v821 = vunpack.c.h.b16 %v503
    %v822 = vunpack.c.l.b16 %v504
    %v823 = vunpack.c.h.b16 %v504
    %v824 = vunpack.c.l.b16 %v505
    %v825 = vunpack.c.h.b16 %v505
    %v826 = vunpack.c.l.b16 %v506
    %v827 = vunpack.c.h.b16 %v506
    %v828 = vunpack.c.l.b16 %v507
    %v829 = vunpack.c.h.b16 %v507
    %v830 = vunpack.c.l.b16 %v508
    %v831 = vunpack.c.h.b16 %v508
    %v832 = vunpack.c.l.b16 %v509
    %v833 = vunpack.c.h.b16 %v509
    %v834 = vunpack.c.l.b16 %v510
    %v835 = vunpack.c.h.b16 %v510
    %v836 = vunpack.c.l.b16 %v511
    %v837 = vunpack.c.h.b16 %v511
    %v838 = vunpack.c.l.b16 %v512
    %v839 = vunpack.c.h.b16 %v512
    %v840 = vunpack.c.l.b16 %v513
    %v841 = vunpack.c.h.b16 %v513
    %v842 = vunpack.c.l.b16 %v514
    %v843 = vunpack.c.h.b16 %v514
    %v844 = vunpack.c.l.b16 %v515
    %v845 = vunpack.c.h.b16 %v515
    %v846 = vunpack.c.l.b16 %v516
    %v847 = vunpack.c.h.b16 %v516
    %v848 = vunpack.c.l.b16 %v517
    %v849 = vunpack.c.h.b16 %v517
    %v850 = vunpack.c.l.b16 %v518
    %v851 = vunpack.c.h.b16 %v518
    %v852 = vunpack.c.l.b16 %v519
    %v853 = vunpack.c.h.b16 %v519
    %v854 = vunpack.c.l.b16 %v520
    %v855 = vunpack.c.h.b16 %v520
    %v856 = vunpack.c.l.b16 %v521
    %v857 = vunpack.c.h.b16 %v521
    %v858 = vunpack.c.l.b16 %v522
    %v859 = vunpack.c.h.b16 %v522
    %v860 = vunpack.c.l.b16 %v523
    %v861 = vunpack.c.h.b16 %v523
    %v862 = vunpack.c.l.b16 %v524
    %v863 = vunpack.c.h.b16 %v524
    %v864 = vunpack.c.l.b16 %v525
    %v865 = vunpack.c.h.b16 %v525
    %v866 = vunpack.c.l.b16 %v526
    %v867 = vunpack.c.h.b16 %v526
    %v868 = vunpack.c.l.b16 %v527
    %v869 = vunpack.c.h.b16 %v527
    %v870 = vunpack.c.l.b16 %v528
    %v871 = vunpack.c.h.b16 %v528
    %v872 = vunpack.c.l.b16 %v529
    %v873 = vunpack.c.h.b16 %v529
    %v874 = vunpack.c.l.b16 %v530
    %v875 = vunpack.c.h.b16 %v530
    %v876 = vunpack.c.l.b16 %v531
    %v877 = vunpack.c.h.b16 %v531
    %v878 = vunpack.c.l.b16 %v532
    %v879 = vunpack.c.h.b16 %v532
    %v880 = vunpack.c.l.b16 %v533
    %v881 = vunpack.c.h.b16 %v533
    %v882 = vunpack.c.l.b16 %v534
    %v883 = vunpack.c.h.b16 %v534
    %v884 = vunpack.c.l.b16 %v535
    %v885 = vunpack.c.h.b16 %v535
    %v886 = vunpack.c.l.b16 %v536
    %v887 = vunpack.c.h.b16 %v536
    %v888 = vunpack.c.l.b16 %v537
    %v889 = vunpack.c.h.b16 %v537
    %v890 = vunpack.c.l.b16 %v538
    %v891 = vunpack.c.h.b16 %v538
    %v892 = vunpack.c.l.b16 %v539
    %v893 = vunpack.c.h.b16 %v539
    %v894 = vunpack.c.l.b16 %v540
    %v895 = vunpack.c.h.b16 %v540
    %v896 = vunpack.c.l.b16 %v541
    %v897 = vunpack.c.h.b16 %v541
    %v898 = vunpack.c.l.b16 %v542
    %v899 = vunpack.c.h.b16 %v542
    %v900 = vunpack.c.l.b16 %v543
    %v901 = vunpack.c.h.b16 %v543
    %v902 = vunpack.c.l.b16 %v544
    %v903 = vunpack.c.h.b16 %v544
    %v904 = vunpack.c.l.b16 %v545
    %v905 = vunpack.c.h.b16 %v545
    %v906 = vunpack.c.l.b16 %v546
    %v907 = vunpack.c.h.b16 %v546
    %v908 = vunpack.c.l.b16 %v547
    %v909 = vunpack.c.h.b16 %v547
    %v910 = vunpack.c.l.b16 %v548
    %v911 = vunpack.c.h.b16 %v548
    %v912 = vunpack.c.l.b16 %v549
    %v913 = vunpack.c.h.b16 %v549
    %v914 = vunpack.c.l.b16 %v550
    %v915 = vunpack.c.h.b16 %v550
    %v916 = vunpack.c.l.b16 %v551
    %v917 = vunpack.c.h.b16 %v551
    %v918 = vunpack.c.l.b16 %v552
    %v919 = vunpack.c.h.b16 %v552
    %v920 = vunpack.c.l.b16 %v553
    %v921 = vunpack.c.h.b16 %v553
    %v922 = vunpack.c.l.b16 %v554
    %v923 = vunpack.c.h.b16 %v554
    %v924 = vunpack.c.l.b16 %v555
    %v925 = vunpack.c.h.b16 %v555
    %v926 = vunpack.c.l.b16 %v556
    %v927 = vunpack.c.h.b16 %v556
    %v928 = vunpack.c.l.b16 %v557
    %v929 = vunpack.c.h.b16 %v557
    %v930 = vunpack.c.l.b16 %v558
    %v931 = vunpack.c.h.b16 %v558
    %v932 = vunpack.c.l.b16 %v559
    %v933 = vunpack.c.h.b16 %v559
    %v934 = vunpack.c.l.b16 %v560
    %v935 = vunpack.c.h.b16 %v560
    %v936 = vunpack.c.l.b16 %v561
    %v937 = vunpack.c.h.b16 %v561
    %v938 = vunpack.c.l.b16 %v562
    %v939 = vunpack.c.h.b16 %v562
    %v940 = vunpack.c.l.b16 %v563
    %v941 = vunpack.c.h.b16 %v563
    %v942 = vunpack.c.l.b16 %v564
    %v943 = vunpack.c.h.b16 %v564
    %v944 = vunpack.c.l.b16 %v565
    %v945 = vunpack.c.h.b16 %v565
    %v946 = vunpack.c.l.b16 %v566
    %v947 = vunpack.c.h.b16 %v566
    %v948 = vunpack.c.l.b16 %v567
    %v949 = vunpack.c.h.b16 %v567
    %v950 = vunpack.c.l.b16 %v568
    %v951 = vunpack.c.h.b16 %v568
    %v952 = vunpack.c.l.b16 %v569
    %v953 = vunpack.c.h.b16 %v569
    %v954 = vunpack.c.l.b16 %v570
    %v955 = vunpack.c.h.b16 %v570
    %v956 = vunpack.c.l.b16 %v571
    %v957 = vunpack.c.h.b16 %v571
    %v958 = vunpack.c.l.b16 %v572
    %v959 = vunpack.c.h.b16 %v572
    %v960 = vunpack.c.l.b16 %v573
    %v961 = vunpack.c.h.b16 %v573
    %v962 = vunpack.c.l.b16 %v574
    %v963 = vunpack.c.h.b16 %v574
    %v964 = vunpack.c.l.b16 %v575
    %v965 = vunpack.c.h.b16 %v575
    %v966 = vunpack.c.l.b16 %v576
    %v967 = vunpack.c.h.b16 %v576
    %v968 = vunpack.c.l.b16 %v577
    %v969 = vunpack.c.h.b16 %v577
    %v970 = vunpack.c.l.b16 %v578
    %v971 = vunpack.c.h.b16 %v578
    %v972 = vunpack.c.l.b16 %v579
    %v973 = vunpack.c.h.b16 %v579
    %v974 = vunpack.c.l.b16 %v580
    %v975 = vunpack.c.h.b16 %v580
    %v976 = vunpack.c.l.b16 %v581
    %v977 = vunpack.c.h.b16 %v581
    %v978 = vunpack.c.l.b16 %v582
    %v979 = vunpack.c.h.b16 %v582
    %v980 = vunpack.c.l.b16 %v583
    %v981 = vunpack.c.h.b16 %v583
    %v982 = vunpack.c.l.b16 %v584
    %v983 = vunpack.c.h.b16 %v584
    %v984 = vunpack.c.l.b16 %v585
    %v985 = vunpack.c.h.b16 %v585
    %v986 = vunpack.c.l.b16 %v586
    %v987 = vunpack.c.h.b16 %v586
    %v988 = vunpack.c.l.b16 %v587
    %v989 = vunpack.c.h.b16 %v587
    %v990 = vunpack.c.l.b16 %v588
    %v991 = vunpack.c.h.b16 %v588
    %v992 = vunpack.c.l.b16 %v589
    %v993 = vunpack.c.h.b16 %v589
    %v994 = vunpack.c.l.b16 %v590
    %v995 = vunpack.c.h.b16 %v590
    %v996 = vunpack.c.l.b16 %v591
    %v997 = vunpack.c.h.b16 %v591
    %v998 = vpack.c.b16 %v746, %v742
    %v999 = vpack.c.b16 %v747, %v743
    %v1000 = vpack.c.b16 %v748, %v744
    %v1001 = vpack.c.b16 %v749, %v745
    %v1002 = vpack.c.b16 %v754, %v750
    %v1003 = vpack.c.b16 %v755, %v751
    %v1004 = vpack.c.b16 %v756, %v752
    %v1005 = vpack.c.b16 %v757, %v753
    %v1006 = vpack.c.b16 %v762, %v758
    %v1007 = vpack.c.b16 %v763, %v759
    %v1008 = vpack.c.b16 %v764, %v760
    %v1009 = vpack.c.b16 %v765, %v761
    %v1010 = vpack.c.b16 %v770, %v766
    %v1011 = vpack.c.b16 %v771, %v767
    %v1012 = vpack.c.b16 %v772, %v768
    %v1013 = vpack.c.b16 %v773, %v769
    %v1014 = vpack.c.b16 %v778, %v774
    %v1015 = vpack.c.b16 %v779, %v775
    %v1016 = vpack.c.b16 %v780, %v776
    %v1017 = vpack.c.b16 %v781, %v777
    %v1018 = vpack.c.b16 %v786, %v782
    %v1019 = vpack.c.b16 %v787, %v783
    %v1020 = vpack.c.b16 %v788, %v784
    %v1021 = vpack.c.b16 %v789, %v785
    %v1022 = vpack.c.b16 %v794, %v790
    %v1023 = vpack.c.b16 %v795, %v791
    %v1024 = vpack.c.b16 %v796, %v792
    %v1025 = vpack.c.b16 %v797, %v793
    %v1026 = vpack.c.b16 %v802, %v798
    %v1027 = vpack.c.b16 %v803, %v799
    %v1028 = vpack.c.b16 %v804, %v800
    %v1029 = vpack.c.b16 %v805, %v801
    %v1030 = vpack.c.b16 %v810, %v806
    %v1031 = vpack.c.b16 %v811, %v807
    %v1032 = vpack.c.b16 %v812, %v808
    %v1033 = vpack.c.b16 %v813, %v809
    %v1034 = vpack.c.b16 %v818, %v814
    %v1035 = vpack.c.b16 %v819, %v815
    %v1036 = vpack.c.b16 %v820, %v816
    %v1037 = vpack.c.b16 %v821, %v817
    %v1038 = vpack.c.b16 %v826, %v822
    %v1039 = vpack.c.b16 %v827, %v823
    %v1040 = vpack.c.b16 %v828, %v824
    %v1041 = vpack.c.b16 %v829, %v825
    %v1042 = vpack.c.b16 %v834, %v830
    %v1043 = vpack.c.b16 %v835, %v831
    %v1044 = vpack.c.b16 %v836, %v832
    %v1045 = vpack.c.b16 %v837, %v833
    %v1046 = vpack.c.b16 %v842, %v838
    %v1047 = vpack.c.b16 %v843, %v839
    %v1048 = vpack.c.b16 %v844, %v840
    %v1049 = vpack.c.b16 %v845, %v841
    %v1050 = vpack.c.b16 %v850, %v846
    %v1051 = vpack.c.b16 %v851, %v847
    %v1052 = vpack.c.b16 %v852, %v848
    %v1053 = vpack.c.b16 %v853, %v849
    %v1054 = vpack.c.b16 %v858, %v854
    %v1055 = vpack.c.b16 %v859, %v855
    %v1056 = vpack.c.b16 %v860, %v856
    %v1057 = vpack.c.b16 %v861, %v857
    %v1058 = vpack.c.b16 %v866, %v862
    %v1059 = vpack.c.b16 %v867, %v863
    %v1060 = vpack.c.b16 %v868, %v864
    %v1061 = vpack.c.b16 %v869, %v865
    %v1062 = vpack.c.b16 %v874, %v870
    %v1063 = vpack.c.b16 %v875, %v871
    %v1064 = vpack.c.b16 %v876, %v872
    %v1065 = vpack.c.b16 %v877, %v873
    %v1066 = vpack.c.b16 %v882, %v878
    %v1067 = vpack.c.b16 %v883, %v879
    %v1068 = vpack.c.b16 %v884, %v880
    %v1069 = vpack.c.b16 %v885, %v881
    %v1070 = vpack.c.b16 %v890, %v886
    %v1071 = vpack.c.b16 %v891, %v887
    %v1072 = vpack.c.b16 %v892, %v888
    %v1073 = vpack.c.b16 %v893, %v889
    %v1074 = vpack.c.b16 %v898, %v894
    %v1075 = vpack.c.b16 %v899, %v895
    %v1076 = vpack.c.b16 %v900, %v896
    %v1077 = vpack.c.b16 %v901, %v897
    %v1078 = vpack.c.b16 %v906, %v902
    %v1079 = vpack.c.b16 %v907, %v903
    %v1080 = vpack.c.b16 %v908, %v904
    %v1081 = vpack.c.b16 %v909, %v905
    %v1082 = vpack.c.b16 %v914, %v910
    %v1083 = vpack.c.b16 %v915, %v911
    %v1084 = vpack.c.b16 %v916, %v912
    %v1085 = vpack.c.b16 %v917, %v913
    %v1086 = vpack.c.b16 %v922, %v918
    %v1087 = vpack.c.b16 %v923, %v919
    %v1088 = vpack.c.b16 %v924, %v920
    %v1089 = vpack.c.b16 %v925, %v921
    %v1090 = vpack.c.b16 %v930, %v926
    %v1091 = vpack.c.b16 %v931, %v927
    %v1092 = vpack.c.b16 %v932, %v928
    %v1093 = vpack.c.b16 %v933, %v929
    %v1094 = vpack.c.b16 %v938, %v934
    %v1095 = vpack.c.b16 %v939, %v935
    %v1096 = vpack.c.b16 %v940, %v936
    %v1097 = vpack.c.b16 %v941, %v937
    %v1098 = vpack.c.b16 %v946, %v942
    %v1099 = vpack.c.b16 %v947, %v943
    %v1100 = vpack.c.b16 %v948, %v944
    %v1101 = vpack.c.b16 %v949, %v945
    %v1102 = vpack.c.b16 %v954, %v950
    %v1103 = vpack.c.b16 %v955, %v951
    %v1104 = vpack.c.b16 %v956, %v952
    %v1105 = vpack.c.b16 %v957, %v953
    %v1106 = vpack.c.b16 %v962, %v958
    %v1107 = vpack.c.b16 %v963, %v959
    %v1108 = vpack.c.b16 %v964, %v960
    %v1109 = vpack.c.b16 %v965, %v961
    %v1110 = vpack.c.b16 %v970, %v966
    %v1111 = vpack.c.b16 %v971, %v967
    %v1112 = vpack.c.b16 %v972, %v968
    %v1113 = vpack.c.b16 %v973, %v969
    %v1114 = vpack.c.b16 %v978, %v974
    %v1115 = vpack.c.b16 %v979, %v975
    %v1116 = vpack.c.b16 %v980, %v976
    %v1117 = vpack.c.b16 %v981, %v977
    %v1118 = vpack.c.b16 %v986, %v982
    %v1119 = vpack.c.b16 %v987, %v983
    %v1120 = vpack.c.b16 %v988, %v984
    %v1121 = vpack.c.b16 %v989, %v985
    %v1122 = vpack.c.b16 %v994, %v990
    %v1123 = vpack.c.b16 %v995, %v991
    %v1124 = vpack.c.b16 %v996, %v992
    %v1125 = vpack.c.b16 %v997, %v993
    %1254 = vmatprep.subr.bf16.mxu0 %v1027
    %1255 = vmatpush1.bf16.msra.mxu0 %v1026
    %1256 = vmatprep.subr.bf16.mxu0 %v1023
    %1257 = vmatpush1.bf16.msra.mxu0 %v1022
    %1258 = vmatprep.subr.bf16.mxu0 %v1019
    %1259 = vmatpush1.bf16.msra.mxu0 %v1018
    %1260 = vmatprep.subr.bf16.mxu0 %v1015
    %1261 = vmatpush1.bf16.msra.mxu0 %v1014
    %1262 = vmatprep.subr.bf16.mxu0 %v1011
    %1263 = vmatpush1.bf16.msra.mxu0 %v1010
    %1264 = vmatprep.subr.bf16.mxu0 %v1007
    %1265 = vmatpush1.bf16.msra.mxu0 %v1006
    %1266 = vmatprep.subr.bf16.mxu0 %v1003
    %1267 = vmatpush1.bf16.msra.mxu0 %v1002
    %1268 = vmatprep.subr.bf16.mxu0 %v999
    %1269 = vmatpush1.bf16.msra.mxu0 %v998
    %1270 = vmatprep.subr.bf16.mxu0 %v1059
    %1271 = vmatpush2.bf16.msra.mxu0 %v1058
    %1272 = vmatprep.subr.bf16.mxu0 %v1055
    %1273 = vmatpush2.bf16.msra.mxu0 %v1054
    %1274 = vmatprep.subr.bf16.mxu0 %v1051
    %1275 = vmatpush2.bf16.msra.mxu0 %v1050
    %1276 = vmatprep.subr.bf16.mxu0 %v1047
    %1277 = vmatpush2.bf16.msra.mxu0 %v1046
    %1278 = vmatprep.subr.bf16.mxu0 %v1043
    %1279 = vmatpush2.bf16.msra.mxu0 %v1042
    %1280 = vmatprep.subr.bf16.mxu0 %v1039
    %1281 = vmatpush2.bf16.msra.mxu0 %v1038
    %1282 = vmatprep.subr.bf16.mxu0 %v1035
    %1283 = vmatpush2.bf16.msra.mxu0 %v1034
    %1284 = vmatprep.subr.bf16.mxu0 %v1031
    %1285 = vmatpush2.bf16.msra.mxu0 %v1030
    %1286 = vmatprep.mubr.bf16.mxu0 %v457
    %1287 = vmatmul.mubr.bf16.gmra.mxu0 %v456
    %v1288 = vpop.f32.mrf.mxu0
    %v1289 = vadd.f32 %v597, %v1288
    %v1290 = vpop.f32.mrf.mxu0
    %v1291 = vadd.f32 %v601, %v1290
    %v1292 = vpop.f32.mrf.mxu0
    %v1293 = vpop.f32.mrf.mxu0
    %1294 = vdwg.mxu0
    %1295 = vmatprep.subr.bf16.mxu0 %v1091
    %1296 = vmatpush1.bf16.msra.mxu0 %v1090
    %1297 = vmatprep.subr.bf16.mxu0 %v1087
    %1298 = vmatpush1.bf16.msra.mxu0 %v1086
    %1299 = vmatprep.subr.bf16.mxu0 %v1083
    %1300 = vmatpush1.bf16.msra.mxu0 %v1082
    %1301 = vmatprep.subr.bf16.mxu0 %v1079
    %1302 = vmatpush1.bf16.msra.mxu0 %v1078
    %1303 = vmatprep.subr.bf16.mxu0 %v1075
    %1304 = vmatpush1.bf16.msra.mxu0 %v1074
    %1305 = vmatprep.subr.bf16.mxu0 %v1071
    %1306 = vmatpush1.bf16.msra.mxu0 %v1070
    %1307 = vmatprep.subr.bf16.mxu0 %v1067
    %1308 = vmatpush1.bf16.msra.mxu0 %v1066
    %1309 = vmatprep.subr.bf16.mxu0 %v1063
    %1310 = vmatpush1.bf16.msra.mxu0 %v1062
    %1311 = vmatprep.subr.bf16.mxu0 %v1123
    %1312 = vmatpush2.bf16.msra.mxu0 %v1122
    %1313 = vmatprep.subr.bf16.mxu0 %v1119
    %1314 = vmatpush2.bf16.msra.mxu0 %v1118
    %1315 = vmatprep.subr.bf16.mxu0 %v1115
    %1316 = vmatpush2.bf16.msra.mxu0 %v1114
    %1317 = vmatprep.subr.bf16.mxu0 %v1111
    %1318 = vmatpush2.bf16.msra.mxu0 %v1110
    %1319 = vmatprep.subr.bf16.mxu0 %v1107
    %1320 = vmatpush2.bf16.msra.mxu0 %v1106
    %1321 = vmatprep.subr.bf16.mxu0 %v1103
    %1322 = vmatpush2.bf16.msra.mxu0 %v1102
    %1323 = vmatprep.subr.bf16.mxu0 %v1099
    %1324 = vmatpush2.bf16.msra.mxu0 %v1098
    %1325 = vmatprep.subr.bf16.mxu0 %v1095
    %1326 = vmatpush2.bf16.msra.mxu0 %v1094
    %1327 = vmatprep.mubr.bf16.mxu0 %v459
    %1328 = vmatmul.mubr.bf16.gmra.mxu0 %v458
    %v1329 = vpop.f32.mrf.mxu0
    %v1330 = vadd.f32 %v1289, %v1329
    %v1331 = vpop.f32.mrf.mxu0
    %v1332 = vadd.f32 %v1291, %v1331
    %v1333 = vpop.f32.mrf.mxu0
    %v1334 = vpop.f32.mrf.mxu0
    %1335 = vdwg.mxu0
    %1336 = vmatprep.subr.bf16.mxu0 %v1029
    %1337 = vmatpush1.bf16.msra.mxu0 %v1028
    %1338 = vmatprep.subr.bf16.mxu0 %v1025
    %1339 = vmatpush1.bf16.msra.mxu0 %v1024
    %1340 = vmatprep.subr.bf16.mxu0 %v1021
    %1341 = vmatpush1.bf16.msra.mxu0 %v1020
    %1342 = vmatprep.subr.bf16.mxu0 %v1017
    %1343 = vmatpush1.bf16.msra.mxu0 %v1016
    %1344 = vmatprep.subr.bf16.mxu0 %v1013
    %1345 = vmatpush1.bf16.msra.mxu0 %v1012
    %1346 = vmatprep.subr.bf16.mxu0 %v1009
    %1347 = vmatpush1.bf16.msra.mxu0 %v1008
    %1348 = vmatprep.subr.bf16.mxu0 %v1005
    %1349 = vmatpush1.bf16.msra.mxu0 %v1004
    %1350 = vmatprep.subr.bf16.mxu0 %v1001
    %1351 = vmatpush1.bf16.msra.mxu0 %v1000
    %1352 = vmatprep.subr.bf16.mxu0 %v1061
    %1353 = vmatpush2.bf16.msra.mxu0 %v1060
    %1354 = vmatprep.subr.bf16.mxu0 %v1057
    %1355 = vmatpush2.bf16.msra.mxu0 %v1056
    %1356 = vmatprep.subr.bf16.mxu0 %v1053
    %1357 = vmatpush2.bf16.msra.mxu0 %v1052
    %1358 = vmatprep.subr.bf16.mxu0 %v1049
    %1359 = vmatpush2.bf16.msra.mxu0 %v1048
    %1360 = vmatprep.subr.bf16.mxu0 %v1045
    %1361 = vmatpush2.bf16.msra.mxu0 %v1044
    %1362 = vmatprep.subr.bf16.mxu0 %v1041
    %1363 = vmatpush2.bf16.msra.mxu0 %v1040
    %1364 = vmatprep.subr.bf16.mxu0 %v1037
    %1365 = vmatpush2.bf16.msra.mxu0 %v1036
    %1366 = vmatprep.subr.bf16.mxu0 %v1033
    %1367 = vmatpush2.bf16.msra.mxu0 %v1032
    %1368 = vmatprep.mubr.bf16.mxu0 %v457
    %1369 = vmatmul.mubr.bf16.gmra.mxu0 %v456
    %v1370 = vpop.f32.mrf.mxu0
    %v1371 = vadd.f32 %v605, %v1370
    %v1372 = vpop.f32.mrf.mxu0
    %v1373 = vadd.f32 %v609, %v1372
    %v1374 = vpop.f32.mrf.mxu0
    %v1375 = vpop.f32.mrf.mxu0
    %1376 = vdwg.mxu0
    %1377 = vmatprep.subr.bf16.mxu0 %v1093
    %1378 = vmatpush1.bf16.msra.mxu0 %v1092
    %1379 = vmatprep.subr.bf16.mxu0 %v1089
    %1380 = vmatpush1.bf16.msra.mxu0 %v1088
    %1381 = vmatprep.subr.bf16.mxu0 %v1085
    %1382 = vmatpush1.bf16.msra.mxu0 %v1084
    %1383 = vmatprep.subr.bf16.mxu0 %v1081
    %1384 = vmatpush1.bf16.msra.mxu0 %v1080
    %1385 = vmatprep.subr.bf16.mxu0 %v1077
    %1386 = vmatpush1.bf16.msra.mxu0 %v1076
    %1387 = vmatprep.subr.bf16.mxu0 %v1073
    %1388 = vmatpush1.bf16.msra.mxu0 %v1072
    %1389 = vmatprep.subr.bf16.mxu0 %v1069
    %1390 = vmatpush1.bf16.msra.mxu0 %v1068
    %1391 = vmatprep.subr.bf16.mxu0 %v1065
    %1392 = vmatpush1.bf16.msra.mxu0 %v1064
    %1393 = vmatprep.subr.bf16.mxu0 %v1125
    %1394 = vmatpush2.bf16.msra.mxu0 %v1124
    %1395 = vmatprep.subr.bf16.mxu0 %v1121
    %1396 = vmatpush2.bf16.msra.mxu0 %v1120
    %1397 = vmatprep.subr.bf16.mxu0 %v1117
    %1398 = vmatpush2.bf16.msra.mxu0 %v1116
    %1399 = vmatprep.subr.bf16.mxu0 %v1113
    %1400 = vmatpush2.bf16.msra.mxu0 %v1112
    %1401 = vmatprep.subr.bf16.mxu0 %v1109
    %1402 = vmatpush2.bf16.msra.mxu0 %v1108
    %1403 = vmatprep.subr.bf16.mxu0 %v1105
    %1404 = vmatpush2.bf16.msra.mxu0 %v1104
    %1405 = vmatprep.subr.bf16.mxu0 %v1101
    %1406 = vmatpush2.bf16.msra.mxu0 %v1100
    %1407 = vmatprep.subr.bf16.mxu0 %v1097
    %1408 = vmatpush2.bf16.msra.mxu0 %v1096
    %1409 = vmatprep.mubr.bf16.mxu0 %v459
    %1410 = vmatmul.mubr.bf16.gmra.mxu0 %v458
    %v1411 = vpop.f32.mrf.mxu0
    %v1412 = vadd.f32 %v1371, %v1411
    %v1413 = vpop.f32.mrf.mxu0
    %v1414 = vadd.f32 %v1373, %v1413
    %v1415 = vpop.f32.mrf.mxu0
    %v1416 = vpop.f32.mrf.mxu0
    %1417 = vdwg.mxu0
    %v1418 = vmax.f32 %v1330, 0.0
    %v1419 = vmax.f32 %v1332, 0.0
    %v1420 = vmax.f32 %v1412, 0.0
    %v1421 = vmax.f32 %v1414, 0.0
    %v1422 = vpack.c.bf16 %v1418, %v1418
    %v1423 = vpack.c.bf16 %v1419, %v1419
    %v1424 = vpack.c.bf16 %v1420, %v1420
    %v1425 = vpack.c.bf16 %v1421, %v1421
    %v1426 = vld [vmem:[#allocation10] sm:$0xff]
    %v1427 = vld [vmem:[#allocation10 + $0x8] sm:$0xff]
    %v1428 = vld [vmem:[#allocation10 + $0x10] sm:$0xff]
    %v1429 = vld [vmem:[#allocation10 + $0x18] sm:$0xff]
    %v1430 = vld [vmem:[#allocation10 + $0x20] sm:$0xff]
    %v1431 = vld [vmem:[#allocation10 + $0x28] sm:$0xff]
    %v1432 = vld [vmem:[#allocation10 + $0x30] sm:$0xff]
    %v1433 = vld [vmem:[#allocation10 + $0x38] sm:$0xff]
    %v1434 = vld [vmem:[#allocation10 + $0x40] sm:$0xff]
    %v1435 = vld [vmem:[#allocation10 + $0x48] sm:$0xff]
    %v1436 = vld [vmem:[#allocation10 + $0x50] sm:$0xff]
    %v1437 = vld [vmem:[#allocation10 + $0x58] sm:$0xff]
    %v1438 = vld [vmem:[#allocation10 + $0x60] sm:$0xff]
    %v1439 = vld [vmem:[#allocation10 + $0x68] sm:$0xff]
    %v1440 = vld [vmem:[#allocation10 + $0x70] sm:$0xff]
    %v1441 = vld [vmem:[#allocation10 + $0x78] sm:$0xff]
    %v1442 = vld [vmem:[#allocation10 + $0x80] sm:$0xff]
    %v1443 = vld [vmem:[#allocation10 + $0x88] sm:$0xff]
    %v1444 = vld [vmem:[#allocation10 + $0x90] sm:$0xff]
    %v1445 = vld [vmem:[#allocation10 + $0x98] sm:$0xff]
    %v1446 = vld [vmem:[#allocation10 + $0xa0] sm:$0xff]
    %v1447 = vld [vmem:[#allocation10 + $0xa8] sm:$0xff]
    %v1448 = vld [vmem:[#allocation10 + $0xb0] sm:$0xff]
    %v1449 = vld [vmem:[#allocation10 + $0xb8] sm:$0xff]
    %v1450 = vld [vmem:[#allocation10 + $0xc0] sm:$0xff]
    %v1451 = vld [vmem:[#allocation10 + $0xc8] sm:$0xff]
    %v1452 = vld [vmem:[#allocation10 + $0xd0] sm:$0xff]
    %v1453 = vld [vmem:[#allocation10 + $0xd8] sm:$0xff]
    %v1454 = vld [vmem:[#allocation10 + $0xe0] sm:$0xff]
    %v1455 = vld [vmem:[#allocation10 + $0xe8] sm:$0xff]
    %v1456 = vld [vmem:[#allocation10 + $0xf0] sm:$0xff]
    %v1457 = vld [vmem:[#allocation10 + $0xf8] sm:$0xff]
    %v1458 = vld [vmem:[#allocation10 + $0x100] sm:$0xff]
    %v1459 = vld [vmem:[#allocation10 + $0x108] sm:$0xff]
    %v1460 = vld [vmem:[#allocation10 + $0x110] sm:$0xff]
    %v1461 = vld [vmem:[#allocation10 + $0x118] sm:$0xff]
    %v1462 = vld [vmem:[#allocation10 + $0x120] sm:$0xff]
    %v1463 = vld [vmem:[#allocation10 + $0x128] sm:$0xff]
    %v1464 = vld [vmem:[#allocation10 + $0x130] sm:$0xff]
    %v1465 = vld [vmem:[#allocation10 + $0x138] sm:$0xff]
    %v1466 = vld [vmem:[#allocation10 + $0x140] sm:$0xff]
    %v1467 = vld [vmem:[#allocation10 + $0x148] sm:$0xff]
    %v1468 = vld [vmem:[#allocation10 + $0x150] sm:$0xff]
    %v1469 = vld [vmem:[#allocation10 + $0x158] sm:$0xff]
    %v1470 = vld [vmem:[#allocation10 + $0x160] sm:$0xff]
    %v1471 = vld [vmem:[#allocation10 + $0x168] sm:$0xff]
    %v1472 = vld [vmem:[#allocation10 + $0x170] sm:$0xff]
    %v1473 = vld [vmem:[#allocation10 + $0x178] sm:$0xff]
    %v1474 = vld [vmem:[#allocation10 + $0x180] sm:$0xff]
    %v1475 = vld [vmem:[#allocation10 + $0x188] sm:$0xff]
    %v1476 = vld [vmem:[#allocation10 + $0x190] sm:$0xff]
    %v1477 = vld [vmem:[#allocation10 + $0x198] sm:$0xff]
    %v1478 = vld [vmem:[#allocation10 + $0x1a0] sm:$0xff]
    %v1479 = vld [vmem:[#allocation10 + $0x1a8] sm:$0xff]
    %v1480 = vld [vmem:[#allocation10 + $0x1b0] sm:$0xff]
    %v1481 = vld [vmem:[#allocation10 + $0x1b8] sm:$0xff]
    %v1482 = vld [vmem:[#allocation10 + $0x1c0] sm:$0xff]
    %v1483 = vld [vmem:[#allocation10 + $0x1c8] sm:$0xff]
    %v1484 = vld [vmem:[#allocation10 + $0x1d0] sm:$0xff]
    %v1485 = vld [vmem:[#allocation10 + $0x1d8] sm:$0xff]
    %v1486 = vld [vmem:[#allocation10 + $0x1e0] sm:$0xff]
    %v1487 = vld [vmem:[#allocation10 + $0x1e8] sm:$0xff]
    %v1488 = vld [vmem:[#allocation10 + $0x1f0] sm:$0xff]
    %v1489 = vld [vmem:[#allocation10 + $0x1f8] sm:$0xff]
    %v1490 = vld [vmem:[#allocation10 + $0x200] sm:$0xff]
    %v1491 = vld [vmem:[#allocation10 + $0x208] sm:$0xff]
    %v1492 = vld [vmem:[#allocation10 + $0x210] sm:$0xff]
    %v1493 = vld [vmem:[#allocation10 + $0x218] sm:$0xff]
    %v1494 = vld [vmem:[#allocation10 + $0x220] sm:$0xff]
    %v1495 = vld [vmem:[#allocation10 + $0x228] sm:$0xff]
    %v1496 = vld [vmem:[#allocation10 + $0x230] sm:$0xff]
    %v1497 = vld [vmem:[#allocation10 + $0x238] sm:$0xff]
    %v1498 = vld [vmem:[#allocation10 + $0x240] sm:$0xff]
    %v1499 = vld [vmem:[#allocation10 + $0x248] sm:$0xff]
    %v1500 = vld [vmem:[#allocation10 + $0x250] sm:$0xff]
    %v1501 = vld [vmem:[#allocation10 + $0x258] sm:$0xff]
    %v1502 = vld [vmem:[#allocation10 + $0x260] sm:$0xff]
    %v1503 = vld [vmem:[#allocation10 + $0x268] sm:$0xff]
    %v1504 = vld [vmem:[#allocation10 + $0x270] sm:$0xff]
    %v1505 = vld [vmem:[#allocation10 + $0x278] sm:$0xff]
    %v1506 = vld [vmem:[#allocation10 + $0x280] sm:$0xff]
    %v1507 = vld [vmem:[#allocation10 + $0x288] sm:$0xff]
    %v1508 = vld [vmem:[#allocation10 + $0x290] sm:$0xff]
    %v1509 = vld [vmem:[#allocation10 + $0x298] sm:$0xff]
    %v1510 = vld [vmem:[#allocation10 + $0x2a0] sm:$0xff]
    %v1511 = vld [vmem:[#allocation10 + $0x2a8] sm:$0xff]
    %v1512 = vld [vmem:[#allocation10 + $0x2b0] sm:$0xff]
    %v1513 = vld [vmem:[#allocation10 + $0x2b8] sm:$0xff]
    %v1514 = vld [vmem:[#allocation10 + $0x2c0] sm:$0xff]
    %v1515 = vld [vmem:[#allocation10 + $0x2c8] sm:$0xff]
    %v1516 = vld [vmem:[#allocation10 + $0x2d0] sm:$0xff]
    %v1517 = vld [vmem:[#allocation10 + $0x2d8] sm:$0xff]
    %v1518 = vld [vmem:[#allocation10 + $0x2e0] sm:$0xff]
    %v1519 = vld [vmem:[#allocation10 + $0x2e8] sm:$0xff]
    %v1520 = vld [vmem:[#allocation10 + $0x2f0] sm:$0xff]
    %v1521 = vld [vmem:[#allocation10 + $0x2f8] sm:$0xff]
    %v1522 = vld [vmem:[#allocation10 + $0x300] sm:$0xff]
    %v1523 = vld [vmem:[#allocation10 + $0x308] sm:$0xff]
    %v1524 = vld [vmem:[#allocation10 + $0x310] sm:$0xff]
    %v1525 = vld [vmem:[#allocation10 + $0x318] sm:$0xff]
    %v1526 = vld [vmem:[#allocation10 + $0x320] sm:$0xff]
    %v1527 = vld [vmem:[#allocation10 + $0x328] sm:$0xff]
    %v1528 = vld [vmem:[#allocation10 + $0x330] sm:$0xff]
    %v1529 = vld [vmem:[#allocation10 + $0x338] sm:$0xff]
    %v1530 = vld [vmem:[#allocation10 + $0x340] sm:$0xff]
    %v1531 = vld [vmem:[#allocation10 + $0x348] sm:$0xff]
    %v1532 = vld [vmem:[#allocation10 + $0x350] sm:$0xff]
    %v1533 = vld [vmem:[#allocation10 + $0x358] sm:$0xff]
    %v1534 = vld [vmem:[#allocation10 + $0x360] sm:$0xff]
    %v1535 = vld [vmem:[#allocation10 + $0x368] sm:$0xff]
    %v1536 = vld [vmem:[#allocation10 + $0x370] sm:$0xff]
    %v1537 = vld [vmem:[#allocation10 + $0x378] sm:$0xff]
    %v1538 = vld [vmem:[#allocation10 + $0x380] sm:$0xff]
    %v1539 = vld [vmem:[#allocation10 + $0x388] sm:$0xff]
    %v1540 = vld [vmem:[#allocation10 + $0x390] sm:$0xff]
    %v1541 = vld [vmem:[#allocation10 + $0x398] sm:$0xff]
    %v1542 = vld [vmem:[#allocation10 + $0x3a0] sm:$0xff]
    %v1543 = vld [vmem:[#allocation10 + $0x3a8] sm:$0xff]
    %v1544 = vld [vmem:[#allocation10 + $0x3b0] sm:$0xff]
    %v1545 = vld [vmem:[#allocation10 + $0x3b8] sm:$0xff]
    %v1546 = vld [vmem:[#allocation10 + $0x3c0] sm:$0xff]
    %v1547 = vld [vmem:[#allocation10 + $0x3c8] sm:$0xff]
    %v1548 = vld [vmem:[#allocation10 + $0x3d0] sm:$0xff]
    %v1549 = vld [vmem:[#allocation10 + $0x3d8] sm:$0xff]
    %v1550 = vld [vmem:[#allocation10 + $0x3e0] sm:$0xff]
    %v1551 = vld [vmem:[#allocation10 + $0x3e8] sm:$0xff]
    %v1552 = vld [vmem:[#allocation10 + $0x3f0] sm:$0xff]
    %v1553 = vld [vmem:[#allocation10 + $0x3f8] sm:$0xff]
    %v1554 = vld [vmem:[#allocation11] sm:$0xf]
    %v1556 = vlaneseq
    %v1557 = vshrl.u32 %v1556, 7
    %v1558 = vsub.s32 0, %v1557
    %v1559 = vrot.slane %v1554, %v1558
    %v1560 = vlaneseq
    %v1561 = vshrl.u32 %v1560, 7
    %v1562 = vsub.s32 1, %v1561
    %v1563 = vrot.slane %v1554, %v1562
    %v1564 = vlaneseq
    %v1565 = vshrl.u32 %v1564, 7
    %v1566 = vsub.s32 2, %v1565
    %v1567 = vrot.slane %v1554, %v1566
    %v1568 = vlaneseq
    %v1569 = vshrl.u32 %v1568, 7
    %v1570 = vsub.s32 3, %v1569
    %v1571 = vrot.slane %v1554, %v1570
    %v1704 = vunpack.c.l.b16 %v1426
    %v1705 = vunpack.c.h.b16 %v1426
    %v1706 = vunpack.c.l.b16 %v1427
    %v1707 = vunpack.c.h.b16 %v1427
    %v1708 = vunpack.c.l.b16 %v1428
    %v1709 = vunpack.c.h.b16 %v1428
    %v1710 = vunpack.c.l.b16 %v1429
    %v1711 = vunpack.c.h.b16 %v1429
    %v1712 = vunpack.c.l.b16 %v1430
    %v1713 = vunpack.c.h.b16 %v1430
    %v1714 = vunpack.c.l.b16 %v1431
    %v1715 = vunpack.c.h.b16 %v1431
    %v1716 = vunpack.c.l.b16 %v1432
    %v1717 = vunpack.c.h.b16 %v1432
    %v1718 = vunpack.c.l.b16 %v1433
    %v1719 = vunpack.c.h.b16 %v1433
    %v1720 = vunpack.c.l.b16 %v1434
    %v1721 = vunpack.c.h.b16 %v1434
    %v1722 = vunpack.c.l.b16 %v1435
    %v1723 = vunpack.c.h.b16 %v1435
    %v1724 = vunpack.c.l.b16 %v1436
    %v1725 = vunpack.c.h.b16 %v1436
    %v1726 = vunpack.c.l.b16 %v1437
    %v1727 = vunpack.c.h.b16 %v1437
    %v1728 = vunpack.c.l.b16 %v1438
    %v1729 = vunpack.c.h.b16 %v1438
    %v1730 = vunpack.c.l.b16 %v1439
    %v1731 = vunpack.c.h.b16 %v1439
    %v1732 = vunpack.c.l.b16 %v1440
    %v1733 = vunpack.c.h.b16 %v1440
    %v1734 = vunpack.c.l.b16 %v1441
    %v1735 = vunpack.c.h.b16 %v1441
    %v1736 = vunpack.c.l.b16 %v1442
    %v1737 = vunpack.c.h.b16 %v1442
    %v1738 = vunpack.c.l.b16 %v1443
    %v1739 = vunpack.c.h.b16 %v1443
    %v1740 = vunpack.c.l.b16 %v1444
    %v1741 = vunpack.c.h.b16 %v1444
    %v1742 = vunpack.c.l.b16 %v1445
    %v1743 = vunpack.c.h.b16 %v1445
    %v1744 = vunpack.c.l.b16 %v1446
    %v1745 = vunpack.c.h.b16 %v1446
    %v1746 = vunpack.c.l.b16 %v1447
    %v1747 = vunpack.c.h.b16 %v1447
    %v1748 = vunpack.c.l.b16 %v1448
    %v1749 = vunpack.c.h.b16 %v1448
    %v1750 = vunpack.c.l.b16 %v1449
    %v1751 = vunpack.c.h.b16 %v1449
    %v1752 = vunpack.c.l.b16 %v1450
    %v1753 = vunpack.c.h.b16 %v1450
    %v1754 = vunpack.c.l.b16 %v1451
    %v1755 = vunpack.c.h.b16 %v1451
    %v1756 = vunpack.c.l.b16 %v1452
    %v1757 = vunpack.c.h.b16 %v1452
    %v1758 = vunpack.c.l.b16 %v1453
    %v1759 = vunpack.c.h.b16 %v1453
    %v1760 = vunpack.c.l.b16 %v1454
    %v1761 = vunpack.c.h.b16 %v1454
    %v1762 = vunpack.c.l.b16 %v1455
    %v1763 = vunpack.c.h.b16 %v1455
    %v1764 = vunpack.c.l.b16 %v1456
    %v1765 = vunpack.c.h.b16 %v1456
    %v1766 = vunpack.c.l.b16 %v1457
    %v1767 = vunpack.c.h.b16 %v1457
    %v1768 = vunpack.c.l.b16 %v1458
    %v1769 = vunpack.c.h.b16 %v1458
    %v1770 = vunpack.c.l.b16 %v1459
    %v1771 = vunpack.c.h.b16 %v1459
    %v1772 = vunpack.c.l.b16 %v1460
    %v1773 = vunpack.c.h.b16 %v1460
    %v1774 = vunpack.c.l.b16 %v1461
    %v1775 = vunpack.c.h.b16 %v1461
    %v1776 = vunpack.c.l.b16 %v1462
    %v1777 = vunpack.c.h.b16 %v1462
    %v1778 = vunpack.c.l.b16 %v1463
    %v1779 = vunpack.c.h.b16 %v1463
    %v1780 = vunpack.c.l.b16 %v1464
    %v1781 = vunpack.c.h.b16 %v1464
    %v1782 = vunpack.c.l.b16 %v1465
    %v1783 = vunpack.c.h.b16 %v1465
    %v1784 = vunpack.c.l.b16 %v1466
    %v1785 = vunpack.c.h.b16 %v1466
    %v1786 = vunpack.c.l.b16 %v1467
    %v1787 = vunpack.c.h.b16 %v1467
    %v1788 = vunpack.c.l.b16 %v1468
    %v1789 = vunpack.c.h.b16 %v1468
    %v1790 = vunpack.c.l.b16 %v1469
    %v1791 = vunpack.c.h.b16 %v1469
    %v1792 = vunpack.c.l.b16 %v1470
    %v1793 = vunpack.c.h.b16 %v1470
    %v1794 = vunpack.c.l.b16 %v1471
    %v1795 = vunpack.c.h.b16 %v1471
    %v1796 = vunpack.c.l.b16 %v1472
    %v1797 = vunpack.c.h.b16 %v1472
    %v1798 = vunpack.c.l.b16 %v1473
    %v1799 = vunpack.c.h.b16 %v1473
    %v1800 = vunpack.c.l.b16 %v1474
    %v1801 = vunpack.c.h.b16 %v1474
    %v1802 = vunpack.c.l.b16 %v1475
    %v1803 = vunpack.c.h.b16 %v1475
    %v1804 = vunpack.c.l.b16 %v1476
    %v1805 = vunpack.c.h.b16 %v1476
    %v1806 = vunpack.c.l.b16 %v1477
    %v1807 = vunpack.c.h.b16 %v1477
    %v1808 = vunpack.c.l.b16 %v1478
    %v1809 = vunpack.c.h.b16 %v1478
    %v1810 = vunpack.c.l.b16 %v1479
    %v1811 = vunpack.c.h.b16 %v1479
    %v1812 = vunpack.c.l.b16 %v1480
    %v1813 = vunpack.c.h.b16 %v1480
    %v1814 = vunpack.c.l.b16 %v1481
    %v1815 = vunpack.c.h.b16 %v1481
    %v1816 = vunpack.c.l.b16 %v1482
    %v1817 = vunpack.c.h.b16 %v1482
    %v1818 = vunpack.c.l.b16 %v1483
    %v1819 = vunpack.c.h.b16 %v1483
    %v1820 = vunpack.c.l.b16 %v1484
    %v1821 = vunpack.c.h.b16 %v1484
    %v1822 = vunpack.c.l.b16 %v1485
    %v1823 = vunpack.c.h.b16 %v1485
    %v1824 = vunpack.c.l.b16 %v1486
    %v1825 = vunpack.c.h.b16 %v1486
    %v1826 = vunpack.c.l.b16 %v1487
    %v1827 = vunpack.c.h.b16 %v1487
    %v1828 = vunpack.c.l.b16 %v1488
    %v1829 = vunpack.c.h.b16 %v1488
    %v1830 = vunpack.c.l.b16 %v1489
    %v1831 = vunpack.c.h.b16 %v1489
    %v1832 = vunpack.c.l.b16 %v1490
    %v1833 = vunpack.c.h.b16 %v1490
    %v1834 = vunpack.c.l.b16 %v1491
    %v1835 = vunpack.c.h.b16 %v1491
    %v1836 = vunpack.c.l.b16 %v1492
    %v1837 = vunpack.c.h.b16 %v1492
    %v1838 = vunpack.c.l.b16 %v1493
    %v1839 = vunpack.c.h.b16 %v1493
    %v1840 = vunpack.c.l.b16 %v1494
    %v1841 = vunpack.c.h.b16 %v1494
    %v1842 = vunpack.c.l.b16 %v1495
    %v1843 = vunpack.c.h.b16 %v1495
    %v1844 = vunpack.c.l.b16 %v1496
    %v1845 = vunpack.c.h.b16 %v1496
    %v1846 = vunpack.c.l.b16 %v1497
    %v1847 = vunpack.c.h.b16 %v1497
    %v1848 = vunpack.c.l.b16 %v1498
    %v1849 = vunpack.c.h.b16 %v1498
    %v1850 = vunpack.c.l.b16 %v1499
    %v1851 = vunpack.c.h.b16 %v1499
    %v1852 = vunpack.c.l.b16 %v1500
    %v1853 = vunpack.c.h.b16 %v1500
    %v1854 = vunpack.c.l.b16 %v1501
    %v1855 = vunpack.c.h.b16 %v1501
    %v1856 = vunpack.c.l.b16 %v1502
    %v1857 = vunpack.c.h.b16 %v1502
    %v1858 = vunpack.c.l.b16 %v1503
    %v1859 = vunpack.c.h.b16 %v1503
    %v1860 = vunpack.c.l.b16 %v1504
    %v1861 = vunpack.c.h.b16 %v1504
    %v1862 = vunpack.c.l.b16 %v1505
    %v1863 = vunpack.c.h.b16 %v1505
    %v1864 = vunpack.c.l.b16 %v1506
    %v1865 = vunpack.c.h.b16 %v1506
    %v1866 = vunpack.c.l.b16 %v1507
    %v1867 = vunpack.c.h.b16 %v1507
    %v1868 = vunpack.c.l.b16 %v1508
    %v1869 = vunpack.c.h.b16 %v1508
    %v1870 = vunpack.c.l.b16 %v1509
    %v1871 = vunpack.c.h.b16 %v1509
    %v1872 = vunpack.c.l.b16 %v1510
    %v1873 = vunpack.c.h.b16 %v1510
    %v1874 = vunpack.c.l.b16 %v1511
    %v1875 = vunpack.c.h.b16 %v1511
    %v1876 = vunpack.c.l.b16 %v1512
    %v1877 = vunpack.c.h.b16 %v1512
    %v1878 = vunpack.c.l.b16 %v1513
    %v1879 = vunpack.c.h.b16 %v1513
    %v1880 = vunpack.c.l.b16 %v1514
    %v1881 = vunpack.c.h.b16 %v1514
    %v1882 = vunpack.c.l.b16 %v1515
    %v1883 = vunpack.c.h.b16 %v1515
    %v1884 = vunpack.c.l.b16 %v1516
    %v1885 = vunpack.c.h.b16 %v1516
    %v1886 = vunpack.c.l.b16 %v1517
    %v1887 = vunpack.c.h.b16 %v1517
    %v1888 = vunpack.c.l.b16 %v1518
    %v1889 = vunpack.c.h.b16 %v1518
    %v1890 = vunpack.c.l.b16 %v1519
    %v1891 = vunpack.c.h.b16 %v1519
    %v1892 = vunpack.c.l.b16 %v1520
    %v1893 = vunpack.c.h.b16 %v1520
    %v1894 = vunpack.c.l.b16 %v1521
    %v1895 = vunpack.c.h.b16 %v1521
    %v1896 = vunpack.c.l.b16 %v1522
    %v1897 = vunpack.c.h.b16 %v1522
    %v1898 = vunpack.c.l.b16 %v1523
    %v1899 = vunpack.c.h.b16 %v1523
    %v1900 = vunpack.c.l.b16 %v1524
    %v1901 = vunpack.c.h.b16 %v1524
    %v1902 = vunpack.c.l.b16 %v1525
    %v1903 = vunpack.c.h.b16 %v1525
    %v1904 = vunpack.c.l.b16 %v1526
    %v1905 = vunpack.c.h.b16 %v1526
    %v1906 = vunpack.c.l.b16 %v1527
    %v1907 = vunpack.c.h.b16 %v1527
    %v1908 = vunpack.c.l.b16 %v1528
    %v1909 = vunpack.c.h.b16 %v1528
    %v1910 = vunpack.c.l.b16 %v1529
    %v1911 = vunpack.c.h.b16 %v1529
    %v1912 = vunpack.c.l.b16 %v1530
    %v1913 = vunpack.c.h.b16 %v1530
    %v1914 = vunpack.c.l.b16 %v1531
    %v1915 = vunpack.c.h.b16 %v1531
    %v1916 = vunpack.c.l.b16 %v1532
    %v1917 = vunpack.c.h.b16 %v1532
    %v1918 = vunpack.c.l.b16 %v1533
    %v1919 = vunpack.c.h.b16 %v1533
    %v1920 = vunpack.c.l.b16 %v1534
    %v1921 = vunpack.c.h.b16 %v1534
    %v1922 = vunpack.c.l.b16 %v1535
    %v1923 = vunpack.c.h.b16 %v1535
    %v1924 = vunpack.c.l.b16 %v1536
    %v1925 = vunpack.c.h.b16 %v1536
    %v1926 = vunpack.c.l.b16 %v1537
    %v1927 = vunpack.c.h.b16 %v1537
    %v1928 = vunpack.c.l.b16 %v1538
    %v1929 = vunpack.c.h.b16 %v1538
    %v1930 = vunpack.c.l.b16 %v1539
    %v1931 = vunpack.c.h.b16 %v1539
    %v1932 = vunpack.c.l.b16 %v1540
    %v1933 = vunpack.c.h.b16 %v1540
    %v1934 = vunpack.c.l.b16 %v1541
    %v1935 = vunpack.c.h.b16 %v1541
    %v1936 = vunpack.c.l.b16 %v1542
    %v1937 = vunpack.c.h.b16 %v1542
    %v1938 = vunpack.c.l.b16 %v1543
    %v1939 = vunpack.c.h.b16 %v1543
    %v1940 = vunpack.c.l.b16 %v1544
    %v1941 = vunpack.c.h.b16 %v1544
    %v1942 = vunpack.c.l.b16 %v1545
    %v1943 = vunpack.c.h.b16 %v1545
    %v1944 = vunpack.c.l.b16 %v1546
    %v1945 = vunpack.c.h.b16 %v1546
    %v1946 = vunpack.c.l.b16 %v1547
    %v1947 = vunpack.c.h.b16 %v1547
    %v1948 = vunpack.c.l.b16 %v1548
    %v1949 = vunpack.c.h.b16 %v1548
    %v1950 = vunpack.c.l.b16 %v1549
    %v1951 = vunpack.c.h.b16 %v1549
    %v1952 = vunpack.c.l.b16 %v1550
    %v1953 = vunpack.c.h.b16 %v1550
    %v1954 = vunpack.c.l.b16 %v1551
    %v1955 = vunpack.c.h.b16 %v1551
    %v1956 = vunpack.c.l.b16 %v1552
    %v1957 = vunpack.c.h.b16 %v1552
    %v1958 = vunpack.c.l.b16 %v1553
    %v1959 = vunpack.c.h.b16 %v1553
    %v1960 = vpack.c.b16 %v1708, %v1704
    %v1961 = vpack.c.b16 %v1709, %v1705
    %v1962 = vpack.c.b16 %v1710, %v1706
    %v1963 = vpack.c.b16 %v1711, %v1707
    %v1964 = vpack.c.b16 %v1716, %v1712
    %v1965 = vpack.c.b16 %v1717, %v1713
    %v1966 = vpack.c.b16 %v1718, %v1714
    %v1967 = vpack.c.b16 %v1719, %v1715
    %v1968 = vpack.c.b16 %v1724, %v1720
    %v1969 = vpack.c.b16 %v1725, %v1721
    %v1970 = vpack.c.b16 %v1726, %v1722
    %v1971 = vpack.c.b16 %v1727, %v1723
    %v1972 = vpack.c.b16 %v1732, %v1728
    %v1973 = vpack.c.b16 %v1733, %v1729
    %v1974 = vpack.c.b16 %v1734, %v1730
    %v1975 = vpack.c.b16 %v1735, %v1731
    %v1976 = vpack.c.b16 %v1740, %v1736
    %v1977 = vpack.c.b16 %v1741, %v1737
    %v1978 = vpack.c.b16 %v1742, %v1738
    %v1979 = vpack.c.b16 %v1743, %v1739
    %v1980 = vpack.c.b16 %v1748, %v1744
    %v1981 = vpack.c.b16 %v1749, %v1745
    %v1982 = vpack.c.b16 %v1750, %v1746
    %v1983 = vpack.c.b16 %v1751, %v1747
    %v1984 = vpack.c.b16 %v1756, %v1752
    %v1985 = vpack.c.b16 %v1757, %v1753
    %v1986 = vpack.c.b16 %v1758, %v1754
    %v1987 = vpack.c.b16 %v1759, %v1755
    %v1988 = vpack.c.b16 %v1764, %v1760
    %v1989 = vpack.c.b16 %v1765, %v1761
    %v1990 = vpack.c.b16 %v1766, %v1762
    %v1991 = vpack.c.b16 %v1767, %v1763
    %v1992 = vpack.c.b16 %v1772, %v1768
    %v1993 = vpack.c.b16 %v1773, %v1769
    %v1994 = vpack.c.b16 %v1774, %v1770
    %v1995 = vpack.c.b16 %v1775, %v1771
    %v1996 = vpack.c.b16 %v1780, %v1776
    %v1997 = vpack.c.b16 %v1781, %v1777
    %v1998 = vpack.c.b16 %v1782, %v1778
    %v1999 = vpack.c.b16 %v1783, %v1779
    %v2000 = vpack.c.b16 %v1788, %v1784
    %v2001 = vpack.c.b16 %v1789, %v1785
    %v2002 = vpack.c.b16 %v1790, %v1786
    %v2003 = vpack.c.b16 %v1791, %v1787
    %v2004 = vpack.c.b16 %v1796, %v1792
    %v2005 = vpack.c.b16 %v1797, %v1793
    %v2006 = vpack.c.b16 %v1798, %v1794
    %v2007 = vpack.c.b16 %v1799, %v1795
    %v2008 = vpack.c.b16 %v1804, %v1800
    %v2009 = vpack.c.b16 %v1805, %v1801
    %v2010 = vpack.c.b16 %v1806, %v1802
    %v2011 = vpack.c.b16 %v1807, %v1803
    %v2012 = vpack.c.b16 %v1812, %v1808
    %v2013 = vpack.c.b16 %v1813, %v1809
    %v2014 = vpack.c.b16 %v1814, %v1810
    %v2015 = vpack.c.b16 %v1815, %v1811
    %v2016 = vpack.c.b16 %v1820, %v1816
    %v2017 = vpack.c.b16 %v1821, %v1817
    %v2018 = vpack.c.b16 %v1822, %v1818
    %v2019 = vpack.c.b16 %v1823, %v1819
    %v2020 = vpack.c.b16 %v1828, %v1824
    %v2021 = vpack.c.b16 %v1829, %v1825
    %v2022 = vpack.c.b16 %v1830, %v1826
    %v2023 = vpack.c.b16 %v1831, %v1827
    %v2024 = vpack.c.b16 %v1836, %v1832
    %v2025 = vpack.c.b16 %v1837, %v1833
    %v2026 = vpack.c.b16 %v1838, %v1834
    %v2027 = vpack.c.b16 %v1839, %v1835
    %v2028 = vpack.c.b16 %v1844, %v1840
    %v2029 = vpack.c.b16 %v1845, %v1841
    %v2030 = vpack.c.b16 %v1846, %v1842
    %v2031 = vpack.c.b16 %v1847, %v1843
    %v2032 = vpack.c.b16 %v1852, %v1848
    %v2033 = vpack.c.b16 %v1853, %v1849
    %v2034 = vpack.c.b16 %v1854, %v1850
    %v2035 = vpack.c.b16 %v1855, %v1851
    %v2036 = vpack.c.b16 %v1860, %v1856
    %v2037 = vpack.c.b16 %v1861, %v1857
    %v2038 = vpack.c.b16 %v1862, %v1858
    %v2039 = vpack.c.b16 %v1863, %v1859
    %v2040 = vpack.c.b16 %v1868, %v1864
    %v2041 = vpack.c.b16 %v1869, %v1865
    %v2042 = vpack.c.b16 %v1870, %v1866
    %v2043 = vpack.c.b16 %v1871, %v1867
    %v2044 = vpack.c.b16 %v1876, %v1872
    %v2045 = vpack.c.b16 %v1877, %v1873
    %v2046 = vpack.c.b16 %v1878, %v1874
    %v2047 = vpack.c.b16 %v1879, %v1875
    %v2048 = vpack.c.b16 %v1884, %v1880
    %v2049 = vpack.c.b16 %v1885, %v1881
    %v2050 = vpack.c.b16 %v1886, %v1882
    %v2051 = vpack.c.b16 %v1887, %v1883
    %v2052 = vpack.c.b16 %v1892, %v1888
    %v2053 = vpack.c.b16 %v1893, %v1889
    %v2054 = vpack.c.b16 %v1894, %v1890
    %v2055 = vpack.c.b16 %v1895, %v1891
    %v2056 = vpack.c.b16 %v1900, %v1896
    %v2057 = vpack.c.b16 %v1901, %v1897
    %v2058 = vpack.c.b16 %v1902, %v1898
    %v2059 = vpack.c.b16 %v1903, %v1899
    %v2060 = vpack.c.b16 %v1908, %v1904
    %v2061 = vpack.c.b16 %v1909, %v1905
    %v2062 = vpack.c.b16 %v1910, %v1906
    %v2063 = vpack.c.b16 %v1911, %v1907
    %v2064 = vpack.c.b16 %v1916, %v1912
    %v2065 = vpack.c.b16 %v1917, %v1913
    %v2066 = vpack.c.b16 %v1918, %v1914
    %v2067 = vpack.c.b16 %v1919, %v1915
    %v2068 = vpack.c.b16 %v1924, %v1920
    %v2069 = vpack.c.b16 %v1925, %v1921
    %v2070 = vpack.c.b16 %v1926, %v1922
    %v2071 = vpack.c.b16 %v1927, %v1923
    %v2072 = vpack.c.b16 %v1932, %v1928
    %v2073 = vpack.c.b16 %v1933, %v1929
    %v2074 = vpack.c.b16 %v1934, %v1930
    %v2075 = vpack.c.b16 %v1935, %v1931
    %v2076 = vpack.c.b16 %v1940, %v1936
    %v2077 = vpack.c.b16 %v1941, %v1937
    %v2078 = vpack.c.b16 %v1942, %v1938
    %v2079 = vpack.c.b16 %v1943, %v1939
    %v2080 = vpack.c.b16 %v1948, %v1944
    %v2081 = vpack.c.b16 %v1949, %v1945
    %v2082 = vpack.c.b16 %v1950, %v1946
    %v2083 = vpack.c.b16 %v1951, %v1947
    %v2084 = vpack.c.b16 %v1956, %v1952
    %v2085 = vpack.c.b16 %v1957, %v1953
    %v2086 = vpack.c.b16 %v1958, %v1954
    %v2087 = vpack.c.b16 %v1959, %v1955
    %2216 = vmatprep.subr.bf16.mxu0 %v1989
    %2217 = vmatpush1.bf16.msra.mxu0 %v1988
    %2218 = vmatprep.subr.bf16.mxu0 %v1985
    %2219 = vmatpush1.bf16.msra.mxu0 %v1984
    %2220 = vmatprep.subr.bf16.mxu0 %v1981
    %2221 = vmatpush1.bf16.msra.mxu0 %v1980
    %2222 = vmatprep.subr.bf16.mxu0 %v1977
    %2223 = vmatpush1.bf16.msra.mxu0 %v1976
    %2224 = vmatprep.subr.bf16.mxu0 %v1973
    %2225 = vmatpush1.bf16.msra.mxu0 %v1972
    %2226 = vmatprep.subr.bf16.mxu0 %v1969
    %2227 = vmatpush1.bf16.msra.mxu0 %v1968
    %2228 = vmatprep.subr.bf16.mxu0 %v1965
    %2229 = vmatpush1.bf16.msra.mxu0 %v1964
    %2230 = vmatprep.subr.bf16.mxu0 %v1961
    %2231 = vmatpush1.bf16.msra.mxu0 %v1960
    %2232 = vmatprep.subr.bf16.mxu0 %v2021
    %2233 = vmatpush2.bf16.msra.mxu0 %v2020
    %2234 = vmatprep.subr.bf16.mxu0 %v2017
    %2235 = vmatpush2.bf16.msra.mxu0 %v2016
    %2236 = vmatprep.subr.bf16.mxu0 %v2013
    %2237 = vmatpush2.bf16.msra.mxu0 %v2012
    %2238 = vmatprep.subr.bf16.mxu0 %v2009
    %2239 = vmatpush2.bf16.msra.mxu0 %v2008
    %2240 = vmatprep.subr.bf16.mxu0 %v2005
    %2241 = vmatpush2.bf16.msra.mxu0 %v2004
    %2242 = vmatprep.subr.bf16.mxu0 %v2001
    %2243 = vmatpush2.bf16.msra.mxu0 %v2000
    %2244 = vmatprep.subr.bf16.mxu0 %v1997
    %2245 = vmatpush2.bf16.msra.mxu0 %v1996
    %2246 = vmatprep.subr.bf16.mxu0 %v1993
    %2247 = vmatpush2.bf16.msra.mxu0 %v1992
    %2248 = vmatprep.mubr.bf16.mxu0 %v461
    %2249 = vmatmul.mubr.bf16.gmra.mxu0 %v460
    %v2250 = vpop.f32.mrf.mxu0
    %v2251 = vadd.f32 %v1559, %v2250
    %v2252 = vpop.f32.mrf.mxu0
    %v2253 = vadd.f32 %v1563, %v2252
    %v2254 = vpop.f32.mrf.mxu0
    %v2255 = vpop.f32.mrf.mxu0
    %2256 = vdwg.mxu0
    %2257 = vmatprep.subr.bf16.mxu0 %v2053
    %2258 = vmatpush1.bf16.msra.mxu0 %v2052
    %2259 = vmatprep.subr.bf16.mxu0 %v2049
    %2260 = vmatpush1.bf16.msra.mxu0 %v2048
    %2261 = vmatprep.subr.bf16.mxu0 %v2045
    %2262 = vmatpush1.bf16.msra.mxu0 %v2044
    %2263 = vmatprep.subr.bf16.mxu0 %v2041
    %2264 = vmatpush1.bf16.msra.mxu0 %v2040
    %2265 = vmatprep.subr.bf16.mxu0 %v2037
    %2266 = vmatpush1.bf16.msra.mxu0 %v2036
    %2267 = vmatprep.subr.bf16.mxu0 %v2033
    %2268 = vmatpush1.bf16.msra.mxu0 %v2032
    %2269 = vmatprep.subr.bf16.mxu0 %v2029
    %2270 = vmatpush1.bf16.msra.mxu0 %v2028
    %2271 = vmatprep.subr.bf16.mxu0 %v2025
    %2272 = vmatpush1.bf16.msra.mxu0 %v2024
    %2273 = vmatprep.subr.bf16.mxu0 %v2085
    %2274 = vmatpush2.bf16.msra.mxu0 %v2084
    %2275 = vmatprep.subr.bf16.mxu0 %v2081
    %2276 = vmatpush2.bf16.msra.mxu0 %v2080
    %2277 = vmatprep.subr.bf16.mxu0 %v2077
    %2278 = vmatpush2.bf16.msra.mxu0 %v2076
    %2279 = vmatprep.subr.bf16.mxu0 %v2073
    %2280 = vmatpush2.bf16.msra.mxu0 %v2072
    %2281 = vmatprep.subr.bf16.mxu0 %v2069
    %2282 = vmatpush2.bf16.msra.mxu0 %v2068
    %2283 = vmatprep.subr.bf16.mxu0 %v2065
    %2284 = vmatpush2.bf16.msra.mxu0 %v2064
    %2285 = vmatprep.subr.bf16.mxu0 %v2061
    %2286 = vmatpush2.bf16.msra.mxu0 %v2060
    %2287 = vmatprep.subr.bf16.mxu0 %v2057
    %2288 = vmatpush2.bf16.msra.mxu0 %v2056
    %2289 = vmatprep.mubr.bf16.mxu0 %v463
    %2290 = vmatmul.mubr.bf16.gmra.mxu0 %v462
    %v2291 = vpop.f32.mrf.mxu0
    %v2292 = vadd.f32 %v2251, %v2291
    %v2293 = vpop.f32.mrf.mxu0
    %v2294 = vadd.f32 %v2253, %v2293
    %v2295 = vpop.f32.mrf.mxu0
    %v2296 = vpop.f32.mrf.mxu0
    %2297 = vdwg.mxu0
    %2298 = vmatprep.subr.bf16.mxu0 %v1991
    %2299 = vmatpush1.bf16.msra.mxu0 %v1990
    %2300 = vmatprep.subr.bf16.mxu0 %v1987
    %2301 = vmatpush1.bf16.msra.mxu0 %v1986
    %2302 = vmatprep.subr.bf16.mxu0 %v1983
    %2303 = vmatpush1.bf16.msra.mxu0 %v1982
    %2304 = vmatprep.subr.bf16.mxu0 %v1979
    %2305 = vmatpush1.bf16.msra.mxu0 %v1978
    %2306 = vmatprep.subr.bf16.mxu0 %v1975
    %2307 = vmatpush1.bf16.msra.mxu0 %v1974
    %2308 = vmatprep.subr.bf16.mxu0 %v1971
    %2309 = vmatpush1.bf16.msra.mxu0 %v1970
    %2310 = vmatprep.subr.bf16.mxu0 %v1967
    %2311 = vmatpush1.bf16.msra.mxu0 %v1966
    %2312 = vmatprep.subr.bf16.mxu0 %v1963
    %2313 = vmatpush1.bf16.msra.mxu0 %v1962
    %2314 = vmatprep.subr.bf16.mxu0 %v2023
    %2315 = vmatpush2.bf16.msra.mxu0 %v2022
    %2316 = vmatprep.subr.bf16.mxu0 %v2019
    %2317 = vmatpush2.bf16.msra.mxu0 %v2018
    %2318 = vmatprep.subr.bf16.mxu0 %v2015
    %2319 = vmatpush2.bf16.msra.mxu0 %v2014
    %2320 = vmatprep.subr.bf16.mxu0 %v2011
    %2321 = vmatpush2.bf16.msra.mxu0 %v2010
    %2322 = vmatprep.subr.bf16.mxu0 %v2007
    %2323 = vmatpush2.bf16.msra.mxu0 %v2006
    %2324 = vmatprep.subr.bf16.mxu0 %v2003
    %2325 = vmatpush2.bf16.msra.mxu0 %v2002
    %2326 = vmatprep.subr.bf16.mxu0 %v1999
    %2327 = vmatpush2.bf16.msra.mxu0 %v1998
    %2328 = vmatprep.subr.bf16.mxu0 %v1995
    %2329 = vmatpush2.bf16.msra.mxu0 %v1994
    %2330 = vmatprep.mubr.bf16.mxu0 %v461
    %2331 = vmatmul.mubr.bf16.gmra.mxu0 %v460
    %v2332 = vpop.f32.mrf.mxu0
    %v2333 = vadd.f32 %v1567, %v2332
    %v2334 = vpop.f32.mrf.mxu0
    %v2335 = vadd.f32 %v1571, %v2334
    %v2336 = vpop.f32.mrf.mxu0
    %v2337 = vpop.f32.mrf.mxu0
    %2338 = vdwg.mxu0
    %2339 = vmatprep.subr.bf16.mxu0 %v2055
    %2340 = vmatpush1.bf16.msra.mxu0 %v2054
    %2341 = vmatprep.subr.bf16.mxu0 %v2051
    %2342 = vmatpush1.bf16.msra.mxu0 %v2050
    %2343 = vmatprep.subr.bf16.mxu0 %v2047
    %2344 = vmatpush1.bf16.msra.mxu0 %v2046
    %2345 = vmatprep.subr.bf16.mxu0 %v2043
    %2346 = vmatpush1.bf16.msra.mxu0 %v2042
    %2347 = vmatprep.subr.bf16.mxu0 %v2039
    %2348 = vmatpush1.bf16.msra.mxu0 %v2038
    %2349 = vmatprep.subr.bf16.mxu0 %v2035
    %2350 = vmatpush1.bf16.msra.mxu0 %v2034
    %2351 = vmatprep.subr.bf16.mxu0 %v2031
    %2352 = vmatpush1.bf16.msra.mxu0 %v2030
    %2353 = vmatprep.subr.bf16.mxu0 %v2027
    %2354 = vmatpush1.bf16.msra.mxu0 %v2026
    %2355 = vmatprep.subr.bf16.mxu0 %v2087
    %2356 = vmatpush2.bf16.msra.mxu0 %v2086
    %2357 = vmatprep.subr.bf16.mxu0 %v2083
    %2358 = vmatpush2.bf16.msra.mxu0 %v2082
    %2359 = vmatprep.subr.bf16.mxu0 %v2079
    %2360 = vmatpush2.bf16.msra.mxu0 %v2078
    %2361 = vmatprep.subr.bf16.mxu0 %v2075
    %2362 = vmatpush2.bf16.msra.mxu0 %v2074
    %2363 = vmatprep.subr.bf16.mxu0 %v2071
    %2364 = vmatpush2.bf16.msra.mxu0 %v2070
    %2365 = vmatprep.subr.bf16.mxu0 %v2067
    %2366 = vmatpush2.bf16.msra.mxu0 %v2066
    %2367 = vmatprep.subr.bf16.mxu0 %v2063
    %2368 = vmatpush2.bf16.msra.mxu0 %v2062
    %2369 = vmatprep.subr.bf16.mxu0 %v2059
    %2370 = vmatpush2.bf16.msra.mxu0 %v2058
    %2371 = vmatprep.mubr.bf16.mxu0 %v463
    %2372 = vmatmul.mubr.bf16.gmra.mxu0 %v462
    %v2373 = vpop.f32.mrf.mxu0
    %v2374 = vadd.f32 %v2333, %v2373
    %v2375 = vpop.f32.mrf.mxu0
    %v2376 = vadd.f32 %v2335, %v2375
    %v2377 = vpop.f32.mrf.mxu0
    %v2378 = vpop.f32.mrf.mxu0
    %2379 = vdwg.mxu0
    %v2380 = vmax.f32 %v2292, 0.0
    %v2381 = vmax.f32 %v2294, 0.0
    %v2382 = vmax.f32 %v2374, 0.0
    %v2383 = vmax.f32 %v2376, 0.0
    %v2384 = vpack.c.bf16 %v2380, %v2380
    %v2385 = vpack.c.bf16 %v2381, %v2381
    %v2386 = vpack.c.bf16 %v2382, %v2382
    %v2387 = vpack.c.bf16 %v2383, %v2383
    %v2388 = vld [vmem:[#allocation13] sm:$0xf]
    %v2389 = vld [vmem:[#allocation13 + $0x4] sm:$0xf]
    %v2390 = vld [vmem:[#allocation13 + $0x8] sm:$0xf]
    %v2391 = vld [vmem:[#allocation13 + $0xc] sm:$0xf]
    %v2392 = vld [vmem:[#allocation13 + $0x10] sm:$0xf]
    %v2393 = vld [vmem:[#allocation13 + $0x14] sm:$0xf]
    %v2394 = vld [vmem:[#allocation13 + $0x18] sm:$0xf]
    %v2395 = vld [vmem:[#allocation13 + $0x1c] sm:$0xf]
    %v2396 = vld [vmem:[#allocation13 + $0x20] sm:$0xf]
    %v2397 = vld [vmem:[#allocation13 + $0x24] sm:$0xf]
    %v2398 = vld [vmem:[#allocation13 + $0x28] sm:$0xf]
    %v2399 = vld [vmem:[#allocation13 + $0x2c] sm:$0xf]
    %v2400 = vld [vmem:[#allocation13 + $0x30] sm:$0xf]
    %v2401 = vld [vmem:[#allocation13 + $0x34] sm:$0xf]
    %v2402 = vld [vmem:[#allocation13 + $0x38] sm:$0xf]
    %v2403 = vld [vmem:[#allocation13 + $0x3c] sm:$0xf]
    %v2404 = vld [vmem:[#allocation13 + $0x40] sm:$0xf]
    %v2405 = vld [vmem:[#allocation13 + $0x44] sm:$0xf]
    %v2406 = vld [vmem:[#allocation13 + $0x48] sm:$0xf]
    %v2407 = vld [vmem:[#allocation13 + $0x4c] sm:$0xf]
    %v2408 = vld [vmem:[#allocation13 + $0x50] sm:$0xf]
    %v2409 = vld [vmem:[#allocation13 + $0x54] sm:$0xf]
    %v2410 = vld [vmem:[#allocation13 + $0x58] sm:$0xf]
    %v2411 = vld [vmem:[#allocation13 + $0x5c] sm:$0xf]
    %v2412 = vld [vmem:[#allocation13 + $0x60] sm:$0xf]
    %v2413 = vld [vmem:[#allocation13 + $0x64] sm:$0xf]
    %v2414 = vld [vmem:[#allocation13 + $0x68] sm:$0xf]
    %v2415 = vld [vmem:[#allocation13 + $0x6c] sm:$0xf]
    %v2416 = vld [vmem:[#allocation13 + $0x70] sm:$0xf]
    %v2417 = vld [vmem:[#allocation13 + $0x74] sm:$0xf]
    %v2418 = vld [vmem:[#allocation13 + $0x78] sm:$0xf]
    %v2419 = vld [vmem:[#allocation13 + $0x7c] sm:$0xf]
    %v2420 = vld [vmem:[#allocation13 + $0x80] sm:$0xf]
    %v2421 = vld [vmem:[#allocation13 + $0x84] sm:$0xf]
    %v2422 = vld [vmem:[#allocation13 + $0x88] sm:$0xf]
    %v2423 = vld [vmem:[#allocation13 + $0x8c] sm:$0xf]
    %v2424 = vld [vmem:[#allocation13 + $0x90] sm:$0xf]
    %v2425 = vld [vmem:[#allocation13 + $0x94] sm:$0xf]
    %v2426 = vld [vmem:[#allocation13 + $0x98] sm:$0xf]
    %v2427 = vld [vmem:[#allocation13 + $0x9c] sm:$0xf]
    %v2428 = vld [vmem:[#allocation13 + $0xa0] sm:$0xf]
    %v2429 = vld [vmem:[#allocation13 + $0xa4] sm:$0xf]
    %v2430 = vld [vmem:[#allocation13 + $0xa8] sm:$0xf]
    %v2431 = vld [vmem:[#allocation13 + $0xac] sm:$0xf]
    %v2432 = vld [vmem:[#allocation13 + $0xb0] sm:$0xf]
    %v2433 = vld [vmem:[#allocation13 + $0xb4] sm:$0xf]
    %v2434 = vld [vmem:[#allocation13 + $0xb8] sm:$0xf]
    %v2435 = vld [vmem:[#allocation13 + $0xbc] sm:$0xf]
    %v2436 = vld [vmem:[#allocation13 + $0xc0] sm:$0xf]
    %v2437 = vld [vmem:[#allocation13 + $0xc4] sm:$0xf]
    %v2438 = vld [vmem:[#allocation13 + $0xc8] sm:$0xf]
    %v2439 = vld [vmem:[#allocation13 + $0xcc] sm:$0xf]
    %v2440 = vld [vmem:[#allocation13 + $0xd0] sm:$0xf]
    %v2441 = vld [vmem:[#allocation13 + $0xd4] sm:$0xf]
    %v2442 = vld [vmem:[#allocation13 + $0xd8] sm:$0xf]
    %v2443 = vld [vmem:[#allocation13 + $0xdc] sm:$0xf]
    %v2444 = vld [vmem:[#allocation13 + $0xe0] sm:$0xf]
    %v2445 = vld [vmem:[#allocation13 + $0xe4] sm:$0xf]
    %v2446 = vld [vmem:[#allocation13 + $0xe8] sm:$0xf]
    %v2447 = vld [vmem:[#allocation13 + $0xec] sm:$0xf]
    %v2448 = vld [vmem:[#allocation13 + $0xf0] sm:$0xf]
    %v2449 = vld [vmem:[#allocation13 + $0xf4] sm:$0xf]
    %v2450 = vld [vmem:[#allocation13 + $0xf8] sm:$0xf]
    %v2451 = vld [vmem:[#allocation13 + $0xfc] sm:$0xf]
    %v2452 = vld [vmem:[#allocation14] sm:$0xf]
    %v2453 = vld [vmem:[#allocation14 + $0x4] sm:$0xf]
    %v2454 = vld [vmem:[#allocation14 + $0x8] sm:$0xf]
    %v2455 = vld [vmem:[#allocation14 + $0xc] sm:$0xf]
    %v2456 = vld [vmem:[#allocation14 + $0x10] sm:$0xf]
    %v2457 = vld [vmem:[#allocation14 + $0x14] sm:$0xf]
    %v2458 = vld [vmem:[#allocation14 + $0x18] sm:$0xf]
    %v2459 = vld [vmem:[#allocation14 + $0x1c] sm:$0xf]
    %v2460 = vld [vmem:[#allocation14 + $0x20] sm:$0xf]
    %v2461 = vld [vmem:[#allocation14 + $0x24] sm:$0xf]
    %v2462 = vld [vmem:[#allocation14 + $0x28] sm:$0xf]
    %v2463 = vld [vmem:[#allocation14 + $0x2c] sm:$0xf]
    %v2464 = vld [vmem:[#allocation14 + $0x30] sm:$0xf]
    %v2465 = vld [vmem:[#allocation14 + $0x34] sm:$0xf]
    %v2466 = vld [vmem:[#allocation14 + $0x38] sm:$0xf]
    %v2467 = vld [vmem:[#allocation14 + $0x3c] sm:$0xf]
    %v2468 = vld [vmem:[#allocation14 + $0x40] sm:$0xf]
    %v2469 = vld [vmem:[#allocation14 + $0x44] sm:$0xf]
    %v2470 = vld [vmem:[#allocation14 + $0x48] sm:$0xf]
    %v2471 = vld [vmem:[#allocation14 + $0x4c] sm:$0xf]
    %v2472 = vld [vmem:[#allocation14 + $0x50] sm:$0xf]
    %v2473 = vld [vmem:[#allocation14 + $0x54] sm:$0xf]
    %v2474 = vld [vmem:[#allocation14 + $0x58] sm:$0xf]
    %v2475 = vld [vmem:[#allocation14 + $0x5c] sm:$0xf]
    %v2476 = vld [vmem:[#allocation14 + $0x60] sm:$0xf]
    %v2477 = vld [vmem:[#allocation14 + $0x64] sm:$0xf]
    %v2478 = vld [vmem:[#allocation14 + $0x68] sm:$0xf]
    %v2479 = vld [vmem:[#allocation14 + $0x6c] sm:$0xf]
    %v2480 = vld [vmem:[#allocation14 + $0x70] sm:$0xf]
    %v2481 = vld [vmem:[#allocation14 + $0x74] sm:$0xf]
    %v2482 = vld [vmem:[#allocation14 + $0x78] sm:$0xf]
    %v2483 = vld [vmem:[#allocation14 + $0x7c] sm:$0xf]
    %v2484 = vld [vmem:[#allocation14 + $0x80] sm:$0xf]
    %v2485 = vld [vmem:[#allocation14 + $0x84] sm:$0xf]
    %v2486 = vld [vmem:[#allocation14 + $0x88] sm:$0xf]
    %v2487 = vld [vmem:[#allocation14 + $0x8c] sm:$0xf]
    %v2488 = vld [vmem:[#allocation14 + $0x90] sm:$0xf]
    %v2489 = vld [vmem:[#allocation14 + $0x94] sm:$0xf]
    %v2490 = vld [vmem:[#allocation14 + $0x98] sm:$0xf]
    %v2491 = vld [vmem:[#allocation14 + $0x9c] sm:$0xf]
    %v2492 = vld [vmem:[#allocation14 + $0xa0] sm:$0xf]
    %v2493 = vld [vmem:[#allocation14 + $0xa4] sm:$0xf]
    %v2494 = vld [vmem:[#allocation14 + $0xa8] sm:$0xf]
    %v2495 = vld [vmem:[#allocation14 + $0xac] sm:$0xf]
    %v2496 = vld [vmem:[#allocation14 + $0xb0] sm:$0xf]
    %v2497 = vld [vmem:[#allocation14 + $0xb4] sm:$0xf]
    %v2498 = vld [vmem:[#allocation14 + $0xb8] sm:$0xf]
    %v2499 = vld [vmem:[#allocation14 + $0xbc] sm:$0xf]
    %v2500 = vld [vmem:[#allocation14 + $0xc0] sm:$0xf]
    %v2501 = vld [vmem:[#allocation14 + $0xc4] sm:$0xf]
    %v2502 = vld [vmem:[#allocation14 + $0xc8] sm:$0xf]
    %v2503 = vld [vmem:[#allocation14 + $0xcc] sm:$0xf]
    %v2504 = vld [vmem:[#allocation14 + $0xd0] sm:$0xf]
    %v2505 = vld [vmem:[#allocation14 + $0xd4] sm:$0xf]
    %v2506 = vld [vmem:[#allocation14 + $0xd8] sm:$0xf]
    %v2507 = vld [vmem:[#allocation14 + $0xdc] sm:$0xf]
    %v2508 = vld [vmem:[#allocation14 + $0xe0] sm:$0xf]
    %v2509 = vld [vmem:[#allocation14 + $0xe4] sm:$0xf]
    %v2510 = vld [vmem:[#allocation14 + $0xe8] sm:$0xf]
    %v2511 = vld [vmem:[#allocation14 + $0xec] sm:$0xf]
    %v2512 = vld [vmem:[#allocation14 + $0xf0] sm:$0xf]
    %v2513 = vld [vmem:[#allocation14 + $0xf4] sm:$0xf]
    %v2514 = vld [vmem:[#allocation14 + $0xf8] sm:$0xf]
    %v2515 = vld [vmem:[#allocation14 + $0xfc] sm:$0xf]
    %v2580 = vunpack.c.l.b16 %v2452
    %v2581 = vunpack.c.l.b16 %v2453
    %v2582 = vunpack.c.l.b16 %v2454
    %v2583 = vunpack.c.l.b16 %v2455
    %v2584 = vunpack.c.l.b16 %v2456
    %v2585 = vunpack.c.l.b16 %v2457
    %v2586 = vunpack.c.l.b16 %v2458
    %v2587 = vunpack.c.l.b16 %v2459
    %v2588 = vunpack.c.l.b16 %v2460
    %v2589 = vunpack.c.l.b16 %v2461
    %v2590 = vunpack.c.l.b16 %v2462
    %v2591 = vunpack.c.l.b16 %v2463
    %v2592 = vunpack.c.l.b16 %v2464
    %v2593 = vunpack.c.l.b16 %v2465
    %v2594 = vunpack.c.l.b16 %v2466
    %v2595 = vunpack.c.l.b16 %v2467
    %v2596 = vunpack.c.l.b16 %v2468
    %v2597 = vunpack.c.l.b16 %v2469
    %v2598 = vunpack.c.l.b16 %v2470
    %v2599 = vunpack.c.l.b16 %v2471
    %v2600 = vunpack.c.l.b16 %v2472
    %v2601 = vunpack.c.l.b16 %v2473
    %v2602 = vunpack.c.l.b16 %v2474
    %v2603 = vunpack.c.l.b16 %v2475
    %v2604 = vunpack.c.l.b16 %v2476
    %v2605 = vunpack.c.l.b16 %v2477
    %v2606 = vunpack.c.l.b16 %v2478
    %v2607 = vunpack.c.l.b16 %v2479
    %v2608 = vunpack.c.l.b16 %v2480
    %v2609 = vunpack.c.l.b16 %v2481
    %v2610 = vunpack.c.l.b16 %v2482
    %v2611 = vunpack.c.l.b16 %v2483
    %v2612 = vunpack.c.l.b16 %v2484
    %v2613 = vunpack.c.l.b16 %v2485
    %v2614 = vunpack.c.l.b16 %v2486
    %v2615 = vunpack.c.l.b16 %v2487
    %v2616 = vunpack.c.l.b16 %v2488
    %v2617 = vunpack.c.l.b16 %v2489
    %v2618 = vunpack.c.l.b16 %v2490
    %v2619 = vunpack.c.l.b16 %v2491
    %v2620 = vunpack.c.l.b16 %v2492
    %v2621 = vunpack.c.l.b16 %v2493
    %v2622 = vunpack.c.l.b16 %v2494
    %v2623 = vunpack.c.l.b16 %v2495
    %v2624 = vunpack.c.l.b16 %v2496
    %v2625 = vunpack.c.l.b16 %v2497
    %v2626 = vunpack.c.l.b16 %v2498
    %v2627 = vunpack.c.l.b16 %v2499
    %v2628 = vunpack.c.l.b16 %v2500
    %v2629 = vunpack.c.l.b16 %v2501
    %v2630 = vunpack.c.l.b16 %v2502
    %v2631 = vunpack.c.l.b16 %v2503
    %v2632 = vunpack.c.l.b16 %v2504
    %v2633 = vunpack.c.l.b16 %v2505
    %v2634 = vunpack.c.l.b16 %v2506
    %v2635 = vunpack.c.l.b16 %v2507
    %v2636 = vunpack.c.l.b16 %v2508
    %v2637 = vunpack.c.l.b16 %v2509
    %v2638 = vunpack.c.l.b16 %v2510
    %v2639 = vunpack.c.l.b16 %v2511
    %v2640 = vunpack.c.l.b16 %v2512
    %v2641 = vunpack.c.l.b16 %v2513
    %v2642 = vunpack.c.l.b16 %v2514
    %v2643 = vunpack.c.l.b16 %v2515
    %v2644 = vpack.c.b16 %v2581, %v2580
    %v2645 = vpack.c.b16 %v2583, %v2582
    %v2646 = vpack.c.b16 %v2585, %v2584
    %v2647 = vpack.c.b16 %v2587, %v2586
    %v2648 = vpack.c.b16 %v2589, %v2588
    %v2649 = vpack.c.b16 %v2591, %v2590
    %v2650 = vpack.c.b16 %v2593, %v2592
    %v2651 = vpack.c.b16 %v2595, %v2594
    %v2652 = vpack.c.b16 %v2597, %v2596
    %v2653 = vpack.c.b16 %v2599, %v2598
    %v2654 = vpack.c.b16 %v2601, %v2600
    %v2655 = vpack.c.b16 %v2603, %v2602
    %v2656 = vpack.c.b16 %v2605, %v2604
    %v2657 = vpack.c.b16 %v2607, %v2606
    %v2658 = vpack.c.b16 %v2609, %v2608
    %v2659 = vpack.c.b16 %v2611, %v2610
    %v2660 = vpack.c.b16 %v2613, %v2612
    %v2661 = vpack.c.b16 %v2615, %v2614
    %v2662 = vpack.c.b16 %v2617, %v2616
    %v2663 = vpack.c.b16 %v2619, %v2618
    %v2664 = vpack.c.b16 %v2621, %v2620
    %v2665 = vpack.c.b16 %v2623, %v2622
    %v2666 = vpack.c.b16 %v2625, %v2624
    %v2667 = vpack.c.b16 %v2627, %v2626
    %v2668 = vpack.c.b16 %v2629, %v2628
    %v2669 = vpack.c.b16 %v2631, %v2630
    %v2670 = vpack.c.b16 %v2633, %v2632
    %v2671 = vpack.c.b16 %v2635, %v2634
    %v2672 = vpack.c.b16 %v2637, %v2636
    %v2673 = vpack.c.b16 %v2639, %v2638
    %v2674 = vpack.c.b16 %v2641, %v2640
    %v2675 = vpack.c.b16 %v2643, %v2642
    %2708 = vmatprep.subr.bf16.mxu0 0
    %2709 = vmatpush1.bf16.msra.mxu0 %v2651
    %2710 = vmatprep.subr.bf16.mxu0 0
    %2711 = vmatpush1.bf16.msra.mxu0 %v2650
    %2712 = vmatprep.subr.bf16.mxu0 0
    %2713 = vmatpush1.bf16.msra.mxu0 %v2649
    %2714 = vmatprep.subr.bf16.mxu0 0
    %2715 = vmatpush1.bf16.msra.mxu0 %v2648
    %2716 = vmatprep.subr.bf16.mxu0 0
    %2717 = vmatpush1.bf16.msra.mxu0 %v2647
    %2718 = vmatprep.subr.bf16.mxu0 0
    %2719 = vmatpush1.bf16.msra.mxu0 %v2646
    %2720 = vmatprep.subr.bf16.mxu0 0
    %2721 = vmatpush1.bf16.msra.mxu0 %v2645
    %2722 = vmatprep.subr.bf16.mxu0 0
    %2723 = vmatpush1.bf16.msra.mxu0 %v2644
    %2724 = vmatprep.subr.bf16.mxu0 0
    %2725 = vmatpush2.bf16.msra.mxu0 %v2659
    %2726 = vmatprep.subr.bf16.mxu0 0
    %2727 = vmatpush2.bf16.msra.mxu0 %v2658
    %2728 = vmatprep.subr.bf16.mxu0 0
    %2729 = vmatpush2.bf16.msra.mxu0 %v2657
    %2730 = vmatprep.subr.bf16.mxu0 0
    %2731 = vmatpush2.bf16.msra.mxu0 %v2656
    %2732 = vmatprep.subr.bf16.mxu0 0
    %2733 = vmatpush2.bf16.msra.mxu0 %v2655
    %2734 = vmatprep.subr.bf16.mxu0 0
    %2735 = vmatpush2.bf16.msra.mxu0 %v2654
    %2736 = vmatprep.subr.bf16.mxu0 0
    %2737 = vmatpush2.bf16.msra.mxu0 %v2653
    %2738 = vmatprep.subr.bf16.mxu0 0
    %2739 = vmatpush2.bf16.msra.mxu0 %v2652
    %2740 = vmatprep.mubr.bf16.mxu0 %v2385
    %2741 = vmatmul.mubr.bf16.gmra.mxu0 %v2384
    %v2742 = vpop.f32.mrf.mxu0
    %v2743 = vadd.f32 0.0, %v2742
    %v2744 = vpop.f32.mrf.mxu0
    %v2745 = vpop.f32.mrf.mxu0
    %v2746 = vpop.f32.mrf.mxu0
    %2747 = vdwg.mxu0
    %2748 = vmatprep.subr.bf16.mxu0 0
    %2749 = vmatpush1.bf16.msra.mxu0 %v2667
    %2750 = vmatprep.subr.bf16.mxu0 0
    %2751 = vmatpush1.bf16.msra.mxu0 %v2666
    %2752 = vmatprep.subr.bf16.mxu0 0
    %2753 = vmatpush1.bf16.msra.mxu0 %v2665
    %2754 = vmatprep.subr.bf16.mxu0 0
    %2755 = vmatpush1.bf16.msra.mxu0 %v2664
    %2756 = vmatprep.subr.bf16.mxu0 0
    %2757 = vmatpush1.bf16.msra.mxu0 %v2663
    %2758 = vmatprep.subr.bf16.mxu0 0
    %2759 = vmatpush1.bf16.msra.mxu0 %v2662
    %2760 = vmatprep.subr.bf16.mxu0 0
    %2761 = vmatpush1.bf16.msra.mxu0 %v2661
    %2762 = vmatprep.subr.bf16.mxu0 0
    %2763 = vmatpush1.bf16.msra.mxu0 %v2660
    %2764 = vmatprep.subr.bf16.mxu0 0
    %2765 = vmatpush2.bf16.msra.mxu0 %v2675
    %2766 = vmatprep.subr.bf16.mxu0 0
    %2767 = vmatpush2.bf16.msra.mxu0 %v2674
    %2768 = vmatprep.subr.bf16.mxu0 0
    %2769 = vmatpush2.bf16.msra.mxu0 %v2673
    %2770 = vmatprep.subr.bf16.mxu0 0
    %2771 = vmatpush2.bf16.msra.mxu0 %v2672
    %2772 = vmatprep.subr.bf16.mxu0 0
    %2773 = vmatpush2.bf16.msra.mxu0 %v2671
    %2774 = vmatprep.subr.bf16.mxu0 0
    %2775 = vmatpush2.bf16.msra.mxu0 %v2670
    %2776 = vmatprep.subr.bf16.mxu0 0
    %2777 = vmatpush2.bf16.msra.mxu0 %v2669
    %2778 = vmatprep.subr.bf16.mxu0 0
    %2779 = vmatpush2.bf16.msra.mxu0 %v2668
    %2780 = vmatprep.mubr.bf16.mxu0 %v2387
    %2781 = vmatmul.mubr.bf16.gmra.mxu0 %v2386
    %v2782 = vpop.f32.mrf.mxu0
    %v2783 = vadd.f32 %v2743, %v2782
    %v2784 = vpop.f32.mrf.mxu0
    %v2785 = vpop.f32.mrf.mxu0
    %v2786 = vpop.f32.mrf.mxu0
    %2787 = vdwg.mxu0
    %v2852 = vunpack.c.l.b16 %v2388
    %v2853 = vunpack.c.l.b16 %v2389
    %v2854 = vunpack.c.l.b16 %v2390
    %v2855 = vunpack.c.l.b16 %v2391
    %v2856 = vunpack.c.l.b16 %v2392
    %v2857 = vunpack.c.l.b16 %v2393
    %v2858 = vunpack.c.l.b16 %v2394
    %v2859 = vunpack.c.l.b16 %v2395
    %v2860 = vunpack.c.l.b16 %v2396
    %v2861 = vunpack.c.l.b16 %v2397
    %v2862 = vunpack.c.l.b16 %v2398
    %v2863 = vunpack.c.l.b16 %v2399
    %v2864 = vunpack.c.l.b16 %v2400
    %v2865 = vunpack.c.l.b16 %v2401
    %v2866 = vunpack.c.l.b16 %v2402
    %v2867 = vunpack.c.l.b16 %v2403
    %v2868 = vunpack.c.l.b16 %v2404
    %v2869 = vunpack.c.l.b16 %v2405
    %v2870 = vunpack.c.l.b16 %v2406
    %v2871 = vunpack.c.l.b16 %v2407
    %v2872 = vunpack.c.l.b16 %v2408
    %v2873 = vunpack.c.l.b16 %v2409
    %v2874 = vunpack.c.l.b16 %v2410
    %v2875 = vunpack.c.l.b16 %v2411
    %v2876 = vunpack.c.l.b16 %v2412
    %v2877 = vunpack.c.l.b16 %v2413
    %v2878 = vunpack.c.l.b16 %v2414
    %v2879 = vunpack.c.l.b16 %v2415
    %v2880 = vunpack.c.l.b16 %v2416
    %v2881 = vunpack.c.l.b16 %v2417
    %v2882 = vunpack.c.l.b16 %v2418
    %v2883 = vunpack.c.l.b16 %v2419
    %v2884 = vunpack.c.l.b16 %v2420
    %v2885 = vunpack.c.l.b16 %v2421
    %v2886 = vunpack.c.l.b16 %v2422
    %v2887 = vunpack.c.l.b16 %v2423
    %v2888 = vunpack.c.l.b16 %v2424
    %v2889 = vunpack.c.l.b16 %v2425
    %v2890 = vunpack.c.l.b16 %v2426
    %v2891 = vunpack.c.l.b16 %v2427
    %v2892 = vunpack.c.l.b16 %v2428
    %v2893 = vunpack.c.l.b16 %v2429
    %v2894 = vunpack.c.l.b16 %v2430
    %v2895 = vunpack.c.l.b16 %v2431
    %v2896 = vunpack.c.l.b16 %v2432
    %v2897 = vunpack.c.l.b16 %v2433
    %v2898 = vunpack.c.l.b16 %v2434
    %v2899 = vunpack.c.l.b16 %v2435
    %v2900 = vunpack.c.l.b16 %v2436
    %v2901 = vunpack.c.l.b16 %v2437
    %v2902 = vunpack.c.l.b16 %v2438
    %v2903 = vunpack.c.l.b16 %v2439
    %v2904 = vunpack.c.l.b16 %v2440
    %v2905 = vunpack.c.l.b16 %v2441
    %v2906 = vunpack.c.l.b16 %v2442
    %v2907 = vunpack.c.l.b16 %v2443
    %v2908 = vunpack.c.l.b16 %v2444
    %v2909 = vunpack.c.l.b16 %v2445
    %v2910 = vunpack.c.l.b16 %v2446
    %v2911 = vunpack.c.l.b16 %v2447
    %v2912 = vunpack.c.l.b16 %v2448
    %v2913 = vunpack.c.l.b16 %v2449
    %v2914 = vunpack.c.l.b16 %v2450
    %v2915 = vunpack.c.l.b16 %v2451
    %v2916 = vpack.c.b16 %v2853, %v2852
    %v2917 = vpack.c.b16 %v2855, %v2854
    %v2918 = vpack.c.b16 %v2857, %v2856
    %v2919 = vpack.c.b16 %v2859, %v2858
    %v2920 = vpack.c.b16 %v2861, %v2860
    %v2921 = vpack.c.b16 %v2863, %v2862
    %v2922 = vpack.c.b16 %v2865, %v2864
    %v2923 = vpack.c.b16 %v2867, %v2866
    %v2924 = vpack.c.b16 %v2869, %v2868
    %v2925 = vpack.c.b16 %v2871, %v2870
    %v2926 = vpack.c.b16 %v2873, %v2872
    %v2927 = vpack.c.b16 %v2875, %v2874
    %v2928 = vpack.c.b16 %v2877, %v2876
    %v2929 = vpack.c.b16 %v2879, %v2878
    %v2930 = vpack.c.b16 %v2881, %v2880
    %v2931 = vpack.c.b16 %v2883, %v2882
    %v2932 = vpack.c.b16 %v2885, %v2884
    %v2933 = vpack.c.b16 %v2887, %v2886
    %v2934 = vpack.c.b16 %v2889, %v2888
    %v2935 = vpack.c.b16 %v2891, %v2890
    %v2936 = vpack.c.b16 %v2893, %v2892
    %v2937 = vpack.c.b16 %v2895, %v2894
    %v2938 = vpack.c.b16 %v2897, %v2896
    %v2939 = vpack.c.b16 %v2899, %v2898
    %v2940 = vpack.c.b16 %v2901, %v2900
    %v2941 = vpack.c.b16 %v2903, %v2902
    %v2942 = vpack.c.b16 %v2905, %v2904
    %v2943 = vpack.c.b16 %v2907, %v2906
    %v2944 = vpack.c.b16 %v2909, %v2908
    %v2945 = vpack.c.b16 %v2911, %v2910
    %v2946 = vpack.c.b16 %v2913, %v2912
    %v2947 = vpack.c.b16 %v2915, %v2914
    %2980 = vmatprep.subr.bf16.mxu0 0
    %2981 = vmatpush1.bf16.msra.mxu0 %v2923
    %2982 = vmatprep.subr.bf16.mxu0 0
    %2983 = vmatpush1.bf16.msra.mxu0 %v2922
    %2984 = vmatprep.subr.bf16.mxu0 0
    %2985 = vmatpush1.bf16.msra.mxu0 %v2921
    %2986 = vmatprep.subr.bf16.mxu0 0
    %2987 = vmatpush1.bf16.msra.mxu0 %v2920
    %2988 = vmatprep.subr.bf16.mxu0 0
    %2989 = vmatpush1.bf16.msra.mxu0 %v2919
    %2990 = vmatprep.subr.bf16.mxu0 0
    %2991 = vmatpush1.bf16.msra.mxu0 %v2918
    %2992 = vmatprep.subr.bf16.mxu0 0
    %2993 = vmatpush1.bf16.msra.mxu0 %v2917
    %2994 = vmatprep.subr.bf16.mxu0 0
    %2995 = vmatpush1.bf16.msra.mxu0 %v2916
    %2996 = vmatprep.subr.bf16.mxu0 0
    %2997 = vmatpush2.bf16.msra.mxu0 %v2931
    %2998 = vmatprep.subr.bf16.mxu0 0
    %2999 = vmatpush2.bf16.msra.mxu0 %v2930
    %3000 = vmatprep.subr.bf16.mxu0 0
    %3001 = vmatpush2.bf16.msra.mxu0 %v2929
    %3002 = vmatprep.subr.bf16.mxu0 0
    %3003 = vmatpush2.bf16.msra.mxu0 %v2928
    %3004 = vmatprep.subr.bf16.mxu0 0
    %3005 = vmatpush2.bf16.msra.mxu0 %v2927
    %3006 = vmatprep.subr.bf16.mxu0 0
    %3007 = vmatpush2.bf16.msra.mxu0 %v2926
    %3008 = vmatprep.subr.bf16.mxu0 0
    %3009 = vmatpush2.bf16.msra.mxu0 %v2925
    %3010 = vmatprep.subr.bf16.mxu0 0
    %3011 = vmatpush2.bf16.msra.mxu0 %v2924
    %3012 = vmatprep.mubr.bf16.mxu0 %v1423
    %3013 = vmatmul.mubr.bf16.gmra.mxu0 %v1422
    %v3014 = vpop.f32.mrf.mxu0
    %v3015 = vadd.f32 %v2783, %v3014
    %v3016 = vpop.f32.mrf.mxu0
    %v3017 = vpop.f32.mrf.mxu0
    %v3018 = vpop.f32.mrf.mxu0
    %3019 = vdwg.mxu0
    %3020 = vmatprep.subr.bf16.mxu0 0
    %3021 = vmatpush1.bf16.msra.mxu0 %v2939
    %3022 = vmatprep.subr.bf16.mxu0 0
    %3023 = vmatpush1.bf16.msra.mxu0 %v2938
    %3024 = vmatprep.subr.bf16.mxu0 0
    %3025 = vmatpush1.bf16.msra.mxu0 %v2937
    %3026 = vmatprep.subr.bf16.mxu0 0
    %3027 = vmatpush1.bf16.msra.mxu0 %v2936
    %3028 = vmatprep.subr.bf16.mxu0 0
    %3029 = vmatpush1.bf16.msra.mxu0 %v2935
    %3030 = vmatprep.subr.bf16.mxu0 0
    %3031 = vmatpush1.bf16.msra.mxu0 %v2934
    %3032 = vmatprep.subr.bf16.mxu0 0
    %3033 = vmatpush1.bf16.msra.mxu0 %v2933
    %3034 = vmatprep.subr.bf16.mxu0 0
    %3035 = vmatpush1.bf16.msra.mxu0 %v2932
    %3036 = vmatprep.subr.bf16.mxu0 0
    %3037 = vmatpush2.bf16.msra.mxu0 %v2947
    %3038 = vmatprep.subr.bf16.mxu0 0
    %3039 = vmatpush2.bf16.msra.mxu0 %v2946
    %3040 = vmatprep.subr.bf16.mxu0 0
    %3041 = vmatpush2.bf16.msra.mxu0 %v2945
    %3042 = vmatprep.subr.bf16.mxu0 0
    %3043 = vmatpush2.bf16.msra.mxu0 %v2944
    %3044 = vmatprep.subr.bf16.mxu0 0
    %3045 = vmatpush2.bf16.msra.mxu0 %v2943
    %3046 = vmatprep.subr.bf16.mxu0 0
    %3047 = vmatpush2.bf16.msra.mxu0 %v2942
    %3048 = vmatprep.subr.bf16.mxu0 0
    %3049 = vmatpush2.bf16.msra.mxu0 %v2941
    %3050 = vmatprep.subr.bf16.mxu0 0
    %3051 = vmatpush2.bf16.msra.mxu0 %v2940
    %3052 = vmatprep.mubr.bf16.mxu0 %v1425
    %3053 = vmatmul.mubr.bf16.gmra.mxu0 %v1424
    %v3054 = vpop.f32.mrf.mxu0
    %v3055 = vadd.f32 %v3015, %v3054
    %v3056 = vpop.f32.mrf.mxu0
    %v3057 = vpop.f32.mrf.mxu0
    %v3058 = vpop.f32.mrf.mxu0
    %3059 = vdwg.mxu0
    %v3060 = vld [vmem:[%s9] sm:$0x1]
    %v3062 = vlaneseq
    %v3063 = vshrl.u32 %v3062, 7
    %v3064 = vsub.s32 0, %v3063
    %v3065 = vrot.slane %v3060, %v3064
    %v3067 = vadd.f32 %v3055, %v3065
    %3068 = vst [vmem:[#allocation16] sm:$0xff] %v3067
    // Predicated region
    $region74: #{simple_ffdqn_forward.1} parent=1 // pred_check
      _
    $region75: #{simple_ffdqn_forward.1} parent=1 // pred_check_branch
      %3070 = sbr.rel (0) target = $region77
    $region76: #{simple_ffdqn_forward.1} parent=1 // pred_region
      %s3072 = ssub.s32 128, 128
      %3073 = vsyncadd [#allocation4], %s3072
      %s3075 = sshll.u32 [#allocation16], 4
      %s3076 = int_to_ptr.vmem [resolvable:$true] %s3075
      %3078 = dma.vmem_to_hbm [thread:$0]  %s3076, 128, %s10, [#allocation4]
    $region77: #{simple_ffdqn_forward.1} parent=1 // pred_fallthru
      _
    // Predicated region
    $region78: #{simple_ffdqn_forward.1} parent=1 // pred_check
      _
    $region79: #{simple_ffdqn_forward.1} parent=1 // pred_check_branch
      %3080 = sbr.rel (0) target = $region81
    $region80: #{simple_ffdqn_forward.1} parent=1 // pred_region
      %3081 = dma.done [#allocation4], 128
    $region81: #{simple_ffdqn_forward.1} parent=1 // pred_fallthru
      _
    %3082 = vsyncpa [#allocation3], 1
    %3083 = vsyncpa [#allocation6], 1
    %3084 = vsyncpa [#allocation9], 1
    %3085 = vsyncpa [#allocation12], 1
    %3086 = vsyncpa [#allocation15], 1
    %3087 = vsyncpa [#allocation4], 1

</llo_original>
